<compile_context>
chip_gen: v5e
topology: v5e:2x2
jax: 0.10.0
libtpu: 0.0.40
codegen_flags: <defaults>
</compile_context>

<pallas_src>
import functools

import jax
import jax.numpy as jnp
import numpy as np
from jax import lax
from jax.experimental import pallas as pl
from jax.experimental.pallas import tpu as pltpu

_VMEM_LIMIT = 64 * 1024 * 1024  # explicit scoped-VMEM limit (safe on v5e/v6e/v7x)


# ---------------------------------------------------------------------------
# Tiled matmul kernels (bf16 operands, f32 accumulation, optional bias once)
# ---------------------------------------------------------------------------
def _matmul_kernel(x_ref, w_ref, o_ref, acc_ref):
    @pl.when(pl.program_id(2) == 0)
    def _():
        acc_ref[...] = jnp.zeros_like(acc_ref)

    acc_ref[...] += jnp.dot(
        x_ref[...], w_ref[...], preferred_element_type=jnp.float32
    )

    @pl.when(pl.program_id(2) == pl.num_programs(2) - 1)
    def _():
        o_ref[...] = acc_ref[...].astype(o_ref.dtype)


def _matmul_bias_kernel(x_ref, w_ref, b_ref, o_ref, acc_ref):
    @pl.when(pl.program_id(2) == 0)
    def _():
        acc_ref[...] = jnp.zeros_like(acc_ref)

    acc_ref[...] += jnp.dot(
        x_ref[...], w_ref[...], preferred_element_type=jnp.float32
    )

    @pl.when(pl.program_id(2) == pl.num_programs(2) - 1)
    def _():
        # Bias broadcast happens exactly once (final K step), in f32.
        o_ref[...] = (acc_ref[...] + b_ref[...]).astype(o_ref.dtype)


def _round_up(x, m):
    return ((x + m - 1) // m) * m


def _pick_tile(dim, target, align):
    """Largest tile <= target, multiple of `align`, that divides dim (or None)."""
    cand = min(target, (dim // align) * align)
    cand = (cand // align) * align
    while cand >= align:
        if dim % cand == 0:
            return cand
        cand -= align
    return None


def _tile_and_pad(dim, target, align):
    """Returns (tile, padded_dim). Pads instead of exploding the block size."""
    if dim <= target:
        return dim, dim  # full-extent block is always legal; no padding
    t = _pick_tile(dim, target, align)
    if t is not None:
        return t, dim
    t = (target // align) * align
    return t, _round_up(dim, t)


def _pallas_matmul(x, w, b=None, *, out_dtype=None, tm=256, tn=512, tk=1024):
    """x:(M,K) @ w:(K,N) [+ b:(N,)] with a pipelined (M,N,K) grid."""
    M, K = x.shape
    K2, N = w.shape
    assert K == K2
    out_dtype = out_dtype or x.dtype

    tm, Mp = _tile_and_pad(M, tm, 8)      # sublane dim: multiples of 8
    tn, Np = _tile_and_pad(N, tn, 128)    # lane dim: multiples of 128
    tk, Kp = _tile_and_pad(K, tk, 128)    # contraction dim

    if Mp != M or Kp != K:
        x = jnp.pad(x, ((0, Mp - M), (0, Kp - K)))
    if Kp != K or Np != N:
        w = jnp.pad(w, ((0, Kp - K), (0, Np - N)))
    if b is not None and Np != N:
        b = jnp.pad(b, (0, Np - N))

    grid = (Mp // tm, Np // tn, Kp // tk)

    in_specs = [
        pl.BlockSpec((tm, tk), lambda i, j, k: (i, k)),
        pl.BlockSpec((tk, tn), lambda i, j, k: (k, j)),
    ]
    operands = (x, w)
    kernel = _matmul_kernel
    if b is not None:
        in_specs.append(pl.BlockSpec((1, tn), lambda i, j, k: (0, j)))
        operands = (x, w, b.reshape(1, Np))
        kernel = _matmul_bias_kernel

    cost = pl.CostEstimate(
        flops=2 * M * N * K,
        transcendentals=0,
        bytes_accessed=(x.dtype.itemsize * M * K
                        + w.dtype.itemsize * K * N
                        + jnp.dtype(out_dtype).itemsize * M * N),
    )
    out = pl.pallas_call(
        kernel,
        out_shape=jax.ShapeDtypeStruct((Mp, Np), out_dtype),
        grid_spec=pltpu.PrefetchScalarGridSpec(
            num_scalar_prefetch=0,
            grid=grid,
            in_specs=in_specs,
            out_specs=pl.BlockSpec((tm, tn), lambda i, j, k: (i, j)),
            scratch_shapes=[pltpu.VMEM((tm, tn), jnp.float32)],
        ),
        compiler_params=pltpu.CompilerParams(
            dimension_semantics=("parallel", "parallel", "arbitrary"),
            vmem_limit_bytes=_VMEM_LIMIT,
        ),
        cost_estimate=cost,
    )(*operands)
    if Mp != M or Np != N:
        out = out[:M, :N]
    return out


# ---------------------------------------------------------------------------
# Fused multi-head attention kernel
#   grid = (B, q_tiles); heads handled in 128-lane-aligned groups.
# ---------------------------------------------------------------------------
def _attn_kernel(qkv_q_ref, qkv_kv_ref, o_ref, *, num_heads, head_dim, scale):
    # qkv_q_ref : (1, TQ, 3C)  bf16 — query rows (only q columns used)
    # qkv_kv_ref: (1, N,  3C)  bf16 — all rows (k and v columns used)
    # o_ref     : (1, TQ, C)
    C = o_ref.shape[2]
    D = head_dim
    H = num_heads

    # Heads per lane-aligned group: >=128 lanes per group whenever possible
    # (D=64 -> pairs of heads).  Group load/store offsets are then multiples
    # of 128 -> no XLU lane shifts on loads, unmasked vst on stores.
    hp = max(1, min(H, 128 // D)) if D < 128 else 1
    while H % hp:
        hp -= 1
    gw = hp * D

    # Static Python loops: lane offsets must be compile-time constants to stay
    # aligned; H is small (<=16) so unrolling is bounded.  Per-group stores
    # keep the (TQ, N) score intermediates short-lived.
    for g in range(H // hp):
        base = g * gw
        q_g = qkv_q_ref[0, :, base:base + gw]                        # (TQ, gw)
        k_g = qkv_kv_ref[0, :, C + base:C + base + gw]               # (N, gw)
        v_g = qkv_kv_ref[0, :, 2 * C + base:2 * C + base + gw]       # (N, gw)
        outs = []
        for j in range(hp):
            # In-register head slices (no extra VMEM traffic); q scaled in
            # bf16 (N*D mults) -- f32 accumulation comes from the MXU.
            q = q_g[:, j * D:(j + 1) * D] * scale
            k = k_g[:, j * D:(j + 1) * D]
            v = v_g[:, j * D:(j + 1) * D]
            # q @ k^T via dot_general contracting the last axis of both
            # operands (no materialized transpose of k in HBM).
            s = lax.dot_general(
                q, k, (((1,), (1,)), ((), ())),
                preferred_element_type=jnp.float32,
            )                                                        # (TQ, N) f32
            m = jnp.max(s, axis=-1, keepdims=True)
            p = jnp.exp(s - m)
            l = jnp.sum(p, axis=-1, keepdims=True)                   # (TQ, 1)
            o = jnp.dot(
                p.astype(v.dtype), v, preferred_element_type=jnp.float32
            )                                                        # (TQ, D) f32
            # Normalize the (TQ, D) output, not the (TQ, N) probabilities;
            # approx reciprocal runs on the otherwise-idle EUP slot.
            o = o * pl.reciprocal(l, approx=True)
            outs.append(o.astype(o_ref.dtype))
        blk = outs[0] if hp == 1 else jnp.concatenate(outs, axis=-1)
        # Channel slot base:base+gw == torch's transpose(1,2).reshape(B,N,C):
        # the post-attention transpose never touches HBM.
        o_ref[0, :, base:base + gw] = blk


def _pallas_attention(qkv, num_heads, scale, out_dtype, *, tq_target=256):
    B, N, C3 = qkv.shape
    C = C3 // 3
    D = C // num_heads

    if N <= tq_target:
        tq = N
    else:
        t = _pick_tile(N, tq_target, 8)
        tq = t if t is not None else N
    gq = N // tq

    kern = functools.partial(
        _attn_kernel, num_heads=num_heads, head_dim=D, scale=scale
    )
    cost = pl.CostEstimate(
        flops=4 * B * N * N * C,
        transcendentals=B * num_heads * N * N,
        bytes_accessed=(qkv.dtype.itemsize * 2 * B * N * C3
                        + jnp.dtype(out_dtype).itemsize * B * N * C),
    )
    cparams = pltpu.CompilerParams(
        dimension_semantics=("parallel",) if gq == 1 else ("parallel", "parallel"),
        vmem_limit_bytes=_VMEM_LIMIT,
    )

    if gq == 1:
        # Single q tile: pass the slab once and reuse the same ref for q/k/v.
        return pl.pallas_call(
            lambda qkv_ref, o_ref: kern(qkv_ref, qkv_ref, o_ref),
            out_shape=jax.ShapeDtypeStruct((B, N, C), out_dtype),
            grid=(B,),
            in_specs=[pl.BlockSpec((1, N, C3), lambda b: (b, 0, 0))],
            out_specs=pl.BlockSpec((1, N, C), lambda b: (b, 0, 0)),
            compiler_params=cparams,
            cost_estimate=cost,
        )(qkv)

    # q-tiled path: the K/V block index is constant across the q-tile axis, so
    # Pallas skips its re-DMA between consecutive steps.
    return pl.pallas_call(
        kern,
        out_shape=jax.ShapeDtypeStruct((B, N, C), out_dtype),
        grid=(B, gq),
        in_specs=[pl.BlockSpec((1, tq, C3), lambda b, i: (b, i, 0)),
                  pl.BlockSpec((1, N, C3), lambda b, i: (b, 0, 0))],
        out_specs=pl.BlockSpec((1, tq, C), lambda b, i: (b, i, 0)),
        compiler_params=cparams,
        cost_estimate=cost,
    )(qkv, qkv)


# ---------------------------------------------------------------------------
# Attention module (forward only)
# ---------------------------------------------------------------------------
def attention_forward(x, params, num_heads):
    B, N, C = x.shape
    assert C % num_heads == 0
    head_dim = C // num_heads
    scale = head_dim ** (-0.5)

    # qkv = x @ W_qkv^T  (qkv_bias=False).  Weight is pre-transposed (C, 3C)
    # and pre-cast to bf16; x is cast to bf16 so the GEMM runs at bf16 MXU
    # peak with f32 accumulation.
    xb = x.astype(jnp.bfloat16).reshape(B * N, C)
    qkv = _pallas_matmul(xb, params["w_qkv_t"], out_dtype=jnp.bfloat16)
    qkv = qkv.reshape(B, N, 3 * C)                                # free reshape

    # attn_drop / proj_drop default to 0.0 -> identity; qk_norm -> Identity.
    o = _pallas_attention(qkv, num_heads, scale, jnp.bfloat16)    # (B, N, C)

    # x = o @ W_proj^T + b_proj ; o is already (B, N, H*D)-ordered, so the
    # projection input is contiguous and lane-dense.  Bias added in f32.
    out = _pallas_matmul(
        o.reshape(B * N, C), params["w_proj_t"], params["b_proj"],
        out_dtype=x.dtype,
    )
    return out.reshape(B, N, C)


def init_params(key, dim):
    k1, k2, k3 = jax.random.split(key, 3)
    # nn.Linear stores (out_features, in_features); we re-lay out ONCE to
    # (in, out) and cast ONCE to bf16 so the forward pass never materializes
    # transposed / re-cast weights.
    w_qkv = jax.random.normal(k1, (3 * dim, dim), jnp.float32) * 0.02
    w_proj = jax.random.normal(k2, (dim, dim), jnp.float32) * 0.02
    b_proj = jax.random.normal(k3, (dim,), jnp.float32) * 0.02
    return {
        "w_qkv_t": jnp.asarray(w_qkv.T, jnp.bfloat16),    # (C, 3C) bf16
        "w_proj_t": jnp.asarray(w_proj.T, jnp.bfloat16),  # (C, C)  bf16
        "b_proj": b_proj,                                 # (C,)    f32
    }


# ---------------------------------------------------------------------------
def _reference(x, params, num_heads):
    B, N, C = x.shape
    D = C // num_heads
    scale = D ** (-0.5)
    wq = params["w_qkv_t"].astype(jnp.float32)
    wp = params["w_proj_t"].astype(jnp.float32)
    qkv = x @ wq
    qkv = qkv.reshape(B, N, 3, num_heads, D).transpose(2, 0, 3, 1, 4)
    q, k, v = qkv[0], qkv[1], qkv[2]
    attn = jax.nn.softmax((q * scale) @ jnp.swapaxes(k, -2, -1), axis=-1)
    o = (attn @ v).transpose(0, 2, 1, 3).reshape(B, N, C)
    return o @ wp + params["b_proj"]


if __name__ == "__main__":
    B, N, C, H = 2, 16, 64, 8      # head_dim = 8

    key = jax.random.PRNGKey(0)
    kx, kp = jax.random.split(key)
    x = jax.random.normal(kx, (B, N, C), jnp.float32)
    params = init_params(kp, C)

    fwd = jax.jit(functools.partial(attention_forward, num_heads=H))
    out = jax.block_until_ready(fwd(x, params))

    ref = _reference(x, params, num_heads=H)
    # Tolerance accounts for bf16 operands on all matmul paths (f32 accum)
    # and the approx (EUP) reciprocal in the softmax normalization.
    np.testing.assert_allclose(
        np.asarray(out, dtype=np.float32), np.asarray(ref, dtype=np.float32),
        rtol=2e-2, atol=2e-3,
    )

    print("KERNEL_OK")
</pallas_src>

<mosaic_0001>
module attributes {stable_mosaic.version = 11 : i64} {
  func.func @_matmul_kernel(%arg0: i32, %arg1: i32, %arg2: i32, %arg3: memref<32x64xbf16, #tpu.memory_space<vmem>>, %arg4: memref<64x192xbf16, #tpu.memory_space<vmem>>, %arg5: memref<32x192xbf16, #tpu.memory_space<vmem>>, %arg6: memref<32x192xf32, #tpu.memory_space<vmem>>) attributes {dimension_semantics = [#tpu.dimension_semantics<parallel>, #tpu.dimension_semantics<parallel>, #tpu.dimension_semantics<arbitrary>], iteration_bounds = array<i64: 1, 1, 1>, scalar_prefetch = 0 : i64, scratch_operands = 1 : i64, tpu.core_type = #tpu.core_type<tc>, window_params = [{transform_indices = @transform_0, window_bounds = array<i64: 32, 64>}, {transform_indices = @transform_1, window_bounds = array<i64: 64, 192>}, {transform_indices = @transform_2, window_bounds = array<i64: 32, 192>}]} {
    %c0_i32 = arith.constant 0 : i32
    %0 = arith.cmpi eq, %arg2, %c0_i32 : i32
    %1 = arith.extui %0 : i1 to i32
    %c0_i32_0 = arith.constant 0 : i32
    %2 = arith.cmpi ne, %1, %c0_i32_0 : i32
    scf.if %2 {
      %cst_10 = arith.constant 0.000000e+00 : f32
      %12 = vector.broadcast %cst_10 : f32 to vector<32x192xf32>
      %c0_11 = arith.constant 0 : index
      %c0_12 = arith.constant 0 : index
      %13 = vector.load %arg6[%c0_11, %c0_12] : memref<32x192xf32, #tpu.memory_space<vmem>>, vector<32x192xf32>
      tpu.vector_store %arg6[%c0_11, %c0_12], %12 {strides = array<i32>} : memref<32x192xf32, #tpu.memory_space<vmem>>, vector<32x192xf32>,
    } else {
    }
    %c0 = arith.constant 0 : index
    %c0_1 = arith.constant 0 : index
    %3 = vector.load %arg6[%c0, %c0_1] : memref<32x192xf32, #tpu.memory_space<vmem>>, vector<32x192xf32>
    %c0_2 = arith.constant 0 : index
    %c0_3 = arith.constant 0 : index
    %4 = vector.load %arg3[%c0_2, %c0_3] : memref<32x64xbf16, #tpu.memory_space<vmem>>, vector<32x64xbf16>
    %c0_4 = arith.constant 0 : index
    %c0_5 = arith.constant 0 : index
    %5 = vector.load %arg4[%c0_4, %c0_5] : memref<64x192xbf16, #tpu.memory_space<vmem>>, vector<64x192xbf16>
    %cst = arith.constant dense<0.000000e+00> : vector<32x192xf32>
    %6 = tpu.matmul %4, %5, %cst {dimension_numbers = #tpu.dot_dimension_numbers<[1], [0], [0], [1], [0, 0, 1, 1], [], []>} : vector<32x64xbf16>, vector<64x192xbf16>, vector<32x192xf32> -> vector<32x192xf32>
    %7 = arith.addf %3, %6 : vector<32x192xf32>
    %c0_6 = arith.constant 0 : index
    %c0_7 = arith.constant 0 : index
    %8 = vector.load %arg6[%c0_6, %c0_7] : memref<32x192xf32, #tpu.memory_space<vmem>>, vector<32x192xf32>
    tpu.vector_store %arg6[%c0_6, %c0_7], %7 {strides = array<i32>} : memref<32x192xf32, #tpu.memory_space<vmem>>, vector<32x192xf32>,
    %c0_i32_8 = arith.constant 0 : i32
    %9 = arith.cmpi eq, %arg2, %c0_i32_8 : i32
    %10 = arith.extui %9 : i1 to i32
    %c0_i32_9 = arith.constant 0 : i32
    %11 = arith.cmpi ne, %10, %c0_i32_9 : i32
    scf.if %11 {
      %c0_10 = arith.constant 0 : index
      %c0_11 = arith.constant 0 : index
      %12 = vector.load %arg6[%c0_10, %c0_11] : memref<32x192xf32, #tpu.memory_space<vmem>>, vector<32x192xf32>
      %13 = arith.truncf %12 : vector<32x192xf32> to vector<32x192xbf16>
      %c0_12 = arith.constant 0 : index
      %c0_13 = arith.constant 0 : index
      %14 = vector.load %arg5[%c0_12, %c0_13] : memref<32x192xbf16, #tpu.memory_space<vmem>>, vector<32x192xbf16>
      tpu.vector_store %arg5[%c0_12, %c0_13], %13 {strides = array<i32>} : memref<32x192xbf16, #tpu.memory_space<vmem>>, vector<32x192xbf16>,
    } else {
    }
    return
  }
  func.func @transform_0(%arg0: i32, %arg1: i32, %arg2: i32) -> (i32, i32) {
    %c0_i32 = arith.constant 0 : i32
    return %arg0, %arg2 : i32, i32
  }
  func.func @transform_1(%arg0: i32, %arg1: i32, %arg2: i32) -> (i32, i32) {
    %c0_i32 = arith.constant 0 : i32
    return %arg2, %arg1 : i32, i32
  }
  func.func @transform_2(%arg0: i32, %arg1: i32, %arg2: i32) -> (i32, i32) {
    %c0_i32 = arith.constant 0 : i32
    return %arg0, %arg1 : i32, i32
  }
}

module attributes {stable_mosaic.version = 11 : i64} {
  func.func @_lambda_(%arg0: i32, %arg1: memref<1x16x192xbf16, #tpu.memory_space<vmem>>, %arg2: memref<1x16x64xbf16, #tpu.memory_space<vmem>>) attributes {dimension_semantics = [#tpu.dimension_semantics<parallel>], iteration_bounds = array<i64: 2>, scalar_prefetch = 0 : i64, scratch_operands = 0 : i64, tpu.core_type = #tpu.core_type<tc>, window_params = [{transform_indices = @transform_0, window_bounds = array<i64: 1, 16, 192>}, {transform_indices = @transform_1, window_bounds = array<i64: 1, 16, 64>}]} {
    %c0 = arith.constant 0 : index
    %c0_0 = arith.constant 0 : index
    %c0_1 = arith.constant 0 : index
    %0 = vector.load %arg1[%c0, %c0_0, %c0_1] : memref<1x16x192xbf16, #tpu.memory_space<vmem>>, vector<1x16x64xbf16>
    %1 = vector.shape_cast %0 : vector<1x16x64xbf16> to vector<16x64xbf16>
    %c0_2 = arith.constant 0 : index
    %c0_3 = arith.constant 0 : index
    %c64 = arith.constant 64 : index
    %2 = vector.load %arg1[%c0_2, %c0_3, %c64] : memref<1x16x192xbf16, #tpu.memory_space<vmem>>, vector<1x16x64xbf16>
    %3 = vector.shape_cast %2 : vector<1x16x64xbf16> to vector<16x64xbf16>
    %c0_4 = arith.constant 0 : index
    %c0_5 = arith.constant 0 : index
    %c128 = arith.constant 128 : index
    %4 = vector.load %arg1[%c0_4, %c0_5, %c128] : memref<1x16x192xbf16, #tpu.memory_space<vmem>>, vector<1x16x64xbf16>
    %5 = vector.shape_cast %4 : vector<1x16x64xbf16> to vector<16x64xbf16>
    %6 = vector.extract_strided_slice %1 {offsets = [0, 0], sizes = [16, 8], strides = [1, 1]} : vector<16x64xbf16> to vector<16x8xbf16>
    %cst = arith.constant 3.535160e-01 : bf16
    %7 = vector.broadcast %cst : bf16 to vector<16x8xbf16>
    %8 = arith.mulf %6, %7 : vector<16x8xbf16>
    %9 = vector.extract_strided_slice %3 {offsets = [0, 0], sizes = [16, 8], strides = [1, 1]} : vector<16x64xbf16> to vector<16x8xbf16>
    %10 = vector.extract_strided_slice %5 {offsets = [0, 0], sizes = [16, 8], strides = [1, 1]} : vector<16x64xbf16> to vector<16x8xbf16>
    %cst_6 = arith.constant dense<0.000000e+00> : vector<16x16xf32>
    %11 = tpu.matmul %8, %9, %cst_6 {dimension_numbers = #tpu.dot_dimension_numbers<[1], [1], [0], [0], [0, 0, 1, 0], [], []>} : vector<16x8xbf16>, vector<16x8xbf16>, vector<16x16xf32> -> vector<16x16xf32>
    %cst_7 = arith.constant dense<0xFF800000> : vector<16xf32>
    %12 = vector.multi_reduction <maximumf>, %11, %cst_7 [1] : vector<16x16xf32> to vector<16xf32>
    %13 = vector.shape_cast %12 : vector<16xf32> to vector<16x1xf32>
    %14 = vector.broadcast %13 : vector<16x1xf32> to vector<16x16xf32>
    %15 = arith.subf %11, %14 : vector<16x16xf32>
    %16 = math.exp %15 : vector<16x16xf32>
    %cst_8 = arith.constant dense<0.000000e+00> : vector<16xf32>
    %17 = vector.multi_reduction <add>, %16, %cst_8 [1] : vector<16x16xf32> to vector<16xf32>
    %18 = vector.shape_cast %17 : vector<16xf32> to vector<16x1xf32>
    %19 = arith.truncf %16 : vector<16x16xf32> to vector<16x16xbf16>
    %cst_9 = arith.constant dense<0.000000e+00> : vector<16x8xf32>
    %20 = tpu.matmul %19, %10, %cst_9 {dimension_numbers = #tpu.dot_dimension_numbers<[1], [0], [0], [1], [0, 0, 1, 1], [], []>} : vector<16x16xbf16>, vector<16x8xbf16>, vector<16x8xf32> -> vector<16x8xf32>
    %21 = tpu.reciprocal %18 {approx = true} : vector<16x1xf32> -> vector<16x1xf32>
    %22 = vector.broadcast %21 : vector<16x1xf32> to vector<16x8xf32>
    %23 = arith.mulf %20, %22 : vector<16x8xf32>
    %24 = arith.truncf %23 : vector<16x8xf32> to vector<16x8xbf16>
    %25 = vector.extract_strided_slice %1 {offsets = [0, 8], sizes = [16, 8], strides = [1, 1]} : vector<16x64xbf16> to vector<16x8xbf16>
    %cst_10 = arith.constant 3.535160e-01 : bf16
    %26 = vector.broadcast %cst_10 : bf16 to vector<16x8xbf16>
    %27 = arith.mulf %25, %26 : vector<16x8xbf16>
    %28 = vector.extract_strided_slice %3 {offsets = [0, 8], sizes = [16, 8], strides = [1, 1]} : vector<16x64xbf16> to vector<16x8xbf16>
    %29 = vector.extract_strided_slice %5 {offsets = [0, 8], sizes = [16, 8], strides = [1, 1]} : vector<16x64xbf16> to vector<16x8xbf16>
    %cst_11 = arith.constant dense<0.000000e+00> : vector<16x16xf32>
    %30 = tpu.matmul %27, %28, %cst_11 {dimension_numbers = #tpu.dot_dimension_numbers<[1], [1], [0], [0], [0, 0, 1, 0], [], []>} : vector<16x8xbf16>, vector<16x8xbf16>, vector<16x16xf32> -> vector<16x16xf32>
    %cst_12 = arith.constant dense<0xFF800000> : vector<16xf32>
    %31 = vector.multi_reduction <maximumf>, %30, %cst_12 [1] : vector<16x16xf32> to vector<16xf32>
    %32 = vector.shape_cast %31 : vector<16xf32> to vector<16x1xf32>
    %33 = vector.broadcast %32 : vector<16x1xf32> to vector<16x16xf32>
    %34 = arith.subf %30, %33 : vector<16x16xf32>
    %35 = math.exp %34 : vector<16x16xf32>
    %cst_13 = arith.constant dense<0.000000e+00> : vector<16xf32>
    %36 = vector.multi_reduction <add>, %35, %cst_13 [1] : vector<16x16xf32> to vector<16xf32>
    %37 = vector.shape_cast %36 : vector<16xf32> to vector<16x1xf32>
    %38 = arith.truncf %35 : vector<16x16xf32> to vector<16x16xbf16>
    %cst_14 = arith.constant dense<0.000000e+00> : vector<16x8xf32>
    %39 = tpu.matmul %38, %29, %cst_14 {dimension_numbers = #tpu.dot_dimension_numbers<[1], [0], [0], [1], [0, 0, 1, 1], [], []>} : vector<16x16xbf16>, vector<16x8xbf16>, vector<16x8xf32> -> vector<16x8xf32>
    %40 = tpu.reciprocal %37 {approx = true} : vector<16x1xf32> -> vector<16x1xf32>
    %41 = vector.broadcast %40 : vector<16x1xf32> to vector<16x8xf32>
    %42 = arith.mulf %39, %41 : vector<16x8xf32>
    %43 = arith.truncf %42 : vector<16x8xf32> to vector<16x8xbf16>
    %44 = vector.extract_strided_slice %1 {offsets = [0, 16], sizes = [16, 8], strides = [1, 1]} : vector<16x64xbf16> to vector<16x8xbf16>
    %cst_15 = arith.constant 3.535160e-01 : bf16
    %45 = vector.broadcast %cst_15 : bf16 to vector<16x8xbf16>
    %46 = arith.mulf %44, %45 : vector<16x8xbf16>
    %47 = vector.extract_strided_slice %3 {offsets = [0, 16], sizes = [16, 8], strides = [1, 1]} : vector<16x64xbf16> to vector<16x8xbf16>
    %48 = vector.extract_strided_slice %5 {offsets = [0, 16], sizes = [16, 8], strides = [1, 1]} : vector<16x64xbf16> to vector<16x8xbf16>
    %cst_16 = arith.constant dense<0.000000e+00> : vector<16x16xf32>
    %49 = tpu.matmul %46, %47, %cst_16 {dimension_numbers = #tpu.dot_dimension_numbers<[1], [1], [0], [0], [0, 0, 1, 0], [], []>} : vector<16x8xbf16>, vector<16x8xbf16>, vector<16x16xf32> -> vector<16x16xf32>
    %cst_17 = arith.constant dense<0xFF800000> : vector<16xf32>
    %50 = vector.multi_reduction <maximumf>, %49, %cst_17 [1] : vector<16x16xf32> to vector<16xf32>
    %51 = vector.shape_cast %50 : vector<16xf32> to vector<16x1xf32>
    %52 = vector.broadcast %51 : vector<16x1xf32> to vector<16x16xf32>
    %53 = arith.subf %49, %52 : vector<16x16xf32>
    %54 = math.exp %53 : vector<16x16xf32>
    %cst_18 = arith.constant dense<0.000000e+00> : vector<16xf32>
    %55 = vector.multi_reduction <add>, %54, %cst_18 [1] : vector<16x16xf32> to vector<16xf32>
    %56 = vector.shape_cast %55 : vector<16xf32> to vector<16x1xf32>
    %57 = arith.truncf %54 : vector<16x16xf32> to vector<16x16xbf16>
    %cst_19 = arith.constant dense<0.000000e+00> : vector<16x8xf32>
    %58 = tpu.matmul %57, %48, %cst_19 {dimension_numbers = #tpu.dot_dimension_numbers<[1], [0], [0], [1], [0, 0, 1, 1], [], []>} : vector<16x16xbf16>, vector<16x8xbf16>, vector<16x8xf32> -> vector<16x8xf32>
    %59 = tpu.reciprocal %56 {approx = true} : vector<16x1xf32> -> vector<16x1xf32>
    %60 = vector.broadcast %59 : vector<16x1xf32> to vector<16x8xf32>
    %61 = arith.mulf %58, %60 : vector<16x8xf32>
    %62 = arith.truncf %61 : vector<16x8xf32> to vector<16x8xbf16>
    %63 = vector.extract_strided_slice %1 {offsets = [0, 24], sizes = [16, 8], strides = [1, 1]} : vector<16x64xbf16> to vector<16x8xbf16>
    %cst_20 = arith.constant 3.535160e-01 : bf16
    %64 = vector.broadcast %cst_20 : bf16 to vector<16x8xbf16>
    %65 = arith.mulf %63, %64 : vector<16x8xbf16>
    %66 = vector.extract_strided_slice %3 {offsets = [0, 24], sizes = [16, 8], strides = [1, 1]} : vector<16x64xbf16> to vector<16x8xbf16>
    %67 = vector.extract_strided_slice %5 {offsets = [0, 24], sizes = [16, 8], strides = [1, 1]} : vector<16x64xbf16> to vector<16x8xbf16>
    %cst_21 = arith.constant dense<0.000000e+00> : vector<16x16xf32>
    %68 = tpu.matmul %65, %66, %cst_21 {dimension_numbers = #tpu.dot_dimension_numbers<[1], [1], [0], [0], [0, 0, 1, 0], [], []>} : vector<16x8xbf16>, vector<16x8xbf16>, vector<16x16xf32> -> vector<16x16xf32>
    %cst_22 = arith.constant dense<0xFF800000> : vector<16xf32>
    %69 = vector.multi_reduction <maximumf>, %68, %cst_22 [1] : vector<16x16xf32> to vector<16xf32>
    %70 = vector.shape_cast %69 : vector<16xf32> to vector<16x1xf32>
    %71 = vector.broadcast %70 : vector<16x1xf32> to vector<16x16xf32>
    %72 = arith.subf %68, %71 : vector<16x16xf32>
    %73 = math.exp %72 : vector<16x16xf32>
    %cst_23 = arith.constant dense<0.000000e+00> : vector<16xf32>
    %74 = vector.multi_reduction <add>, %73, %cst_23 [1] : vector<16x16xf32> to vector<16xf32>
    %75 = vector.shape_cast %74 : vector<16xf32> to vector<16x1xf32>
    %76 = arith.truncf %73 : vector<16x16xf32> to vector<16x16xbf16>
    %cst_24 = arith.constant dense<0.000000e+00> : vector<16x8xf32>
    %77 = tpu.matmul %76, %67, %cst_24 {dimension_numbers = #tpu.dot_dimension_numbers<[1], [0], [0], [1], [0, 0, 1, 1], [], []>} : vector<16x16xbf16>, vector<16x8xbf16>, vector<16x8xf32> -> vector<16x8xf32>
    %78 = tpu.reciprocal %75 {approx = true} : vector<16x1xf32> -> vector<16x1xf32>
    %79 = vector.broadcast %78 : vector<16x1xf32> to vector<16x8xf32>
    %80 = arith.mulf %77, %79 : vector<16x8xf32>
    %81 = arith.truncf %80 : vector<16x8xf32> to vector<16x8xbf16>
    %82 = vector.extract_strided_slice %1 {offsets = [0, 32], sizes = [16, 8], strides = [1, 1]} : vector<16x64xbf16> to vector<16x8xbf16>
    %cst_25 = arith.constant 3.535160e-01 : bf16
    %83 = vector.broadcast %cst_25 : bf16 to vector<16x8xbf16>
    %84 = arith.mulf %82, %83 : vector<16x8xbf16>
    %85 = vector.extract_strided_slice %3 {offsets = [0, 32], sizes = [16, 8], strides = [1, 1]} : vector<16x64xbf16> to vector<16x8xbf16>
    %86 = vector.extract_strided_slice %5 {offsets = [0, 32], sizes = [16, 8], strides = [1, 1]} : vector<16x64xbf16> to vector<16x8xbf16>
    %cst_26 = arith.constant dense<0.000000e+00> : vector<16x16xf32>
    %87 = tpu.matmul %84, %85, %cst_26 {dimension_numbers = #tpu.dot_dimension_numbers<[1], [1], [0], [0], [0, 0, 1, 0], [], []>} : vector<16x8xbf16>, vector<16x8xbf16>, vector<16x16xf32> -> vector<16x16xf32>
    %cst_27 = arith.constant dense<0xFF800000> : vector<16xf32>
    %88 = vector.multi_reduction <maximumf>, %87, %cst_27 [1] : vector<16x16xf32> to vector<16xf32>
    %89 = vector.shape_cast %88 : vector<16xf32> to vector<16x1xf32>
    %90 = vector.broadcast %89 : vector<16x1xf32> to vector<16x16xf32>
    %91 = arith.subf %87, %90 : vector<16x16xf32>
    %92 = math.exp %91 : vector<16x16xf32>
    %cst_28 = arith.constant dense<0.000000e+00> : vector<16xf32>
    %93 = vector.multi_reduction <add>, %92, %cst_28 [1] : vector<16x16xf32> to vector<16xf32>
    %94 = vector.shape_cast %93 : vector<16xf32> to vector<16x1xf32>
    %95 = arith.truncf %92 : vector<16x16xf32> to vector<16x16xbf16>
    %cst_29 = arith.constant dense<0.000000e+00> : vector<16x8xf32>
    %96 = tpu.matmul %95, %86, %cst_29 {dimension_numbers = #tpu.dot_dimension_numbers<[1], [0], [0], [1], [0, 0, 1, 1], [], []>} : vector<16x16xbf16>, vector<16x8xbf16>, vector<16x8xf32> -> vector<16x8xf32>
    %97 = tpu.reciprocal %94 {approx = true} : vector<16x1xf32> -> vector<16x1xf32>
    %98 = vector.broadcast %97 : vector<16x1xf32> to vector<16x8xf32>
    %99 = arith.mulf %96, %98 : vector<16x8xf32>
    %100 = arith.truncf %99 : vector<16x8xf32> to vector<16x8xbf16>
    %101 = vector.extract_strided_slice %1 {offsets = [0, 40], sizes = [16, 8], strides = [1, 1]} : vector<16x64xbf16> to vector<16x8xbf16>
    %cst_30 = arith.constant 3.535160e-01 : bf16
    %102 = vector.broadcast %cst_30 : bf16 to vector<16x8xbf16>
    %103 = arith.mulf %101, %102 : vector<16x8xbf16>
    %104 = vector.extract_strided_slice %3 {offsets = [0, 40], sizes = [16, 8], strides = [1, 1]} : vector<16x64xbf16> to vector<16x8xbf16>
    %105 = vector.extract_strided_slice %5 {offsets = [0, 40], sizes = [16, 8], strides = [1, 1]} : vector<16x64xbf16> to vector<16x8xbf16>
    %cst_31 = arith.constant dense<0.000000e+00> : vector<16x16xf32>
    %106 = tpu.matmul %103, %104, %cst_31 {dimension_numbers = #tpu.dot_dimension_numbers<[1], [1], [0], [0], [0, 0, 1, 0], [], []>} : vector<16x8xbf16>, vector<16x8xbf16>, vector<16x16xf32> -> vector<16x16xf32>
    %cst_32 = arith.constant dense<0xFF800000> : vector<16xf32>
    %107 = vector.multi_reduction <maximumf>, %106, %cst_32 [1] : vector<16x16xf32> to vector<16xf32>
    %108 = vector.shape_cast %107 : vector<16xf32> to vector<16x1xf32>
    %109 = vector.broadcast %108 : vector<16x1xf32> to vector<16x16xf32>
    %110 = arith.subf %106, %109 : vector<16x16xf32>
    %111 = math.exp %110 : vector<16x16xf32>
    %cst_33 = arith.constant dense<0.000000e+00> : vector<16xf32>
    %112 = vector.multi_reduction <add>, %111, %cst_33 [1] : vector<16x16xf32> to vector<16xf32>
    %113 = vector.shape_cast %112 : vector<16xf32> to vector<16x1xf32>
    %114 = arith.truncf %111 : vector<16x16xf32> to vector<16x16xbf16>
    %cst_34 = arith.constant dense<0.000000e+00> : vector<16x8xf32>
    %115 = tpu.matmul %114, %105, %cst_34 {dimension_numbers = #tpu.dot_dimension_numbers<[1], [0], [0], [1], [0, 0, 1, 1], [], []>} : vector<16x16xbf16>, vector<16x8xbf16>, vector<16x8xf32> -> vector<16x8xf32>
    %116 = tpu.reciprocal %113 {approx = true} : vector<16x1xf32> -> vector<16x1xf32>
    %117 = vector.broadcast %116 : vector<16x1xf32> to vector<16x8xf32>
    %118 = arith.mulf %115, %117 : vector<16x8xf32>
    %119 = arith.truncf %118 : vector<16x8xf32> to vector<16x8xbf16>
    %120 = vector.extract_strided_slice %1 {offsets = [0, 48], sizes = [16, 8], strides = [1, 1]} : vector<16x64xbf16> to vector<16x8xbf16>
    %cst_35 = arith.constant 3.535160e-01 : bf16
    %121 = vector.broadcast %cst_35 : bf16 to vector<16x8xbf16>
    %122 = arith.mulf %120, %121 : vector<16x8xbf16>
    %123 = vector.extract_strided_slice %3 {offsets = [0, 48], sizes = [16, 8], strides = [1, 1]} : vector<16x64xbf16> to vector<16x8xbf16>
    %124 = vector.extract_strided_slice %5 {offsets = [0, 48], sizes = [16, 8], strides = [1, 1]} : vector<16x64xbf16> to vector<16x8xbf16>
    %cst_36 = arith.constant dense<0.000000e+00> : vector<16x16xf32>
    %125 = tpu.matmul %122, %123, %cst_36 {dimension_numbers = #tpu.dot_dimension_numbers<[1], [1], [0], [0], [0, 0, 1, 0], [], []>} : vector<16x8xbf16>, vector<16x8xbf16>, vector<16x16xf32> -> vector<16x16xf32>
    %cst_37 = arith.constant dense<0xFF800000> : vector<16xf32>
    %126 = vector.multi_reduction <maximumf>, %125, %cst_37 [1] : vector<16x16xf32> to vector<16xf32>
    %127 = vector.shape_cast %126 : vector<16xf32> to vector<16x1xf32>
    %128 = vector.broadcast %127 : vector<16x1xf32> to vector<16x16xf32>
    %129 = arith.subf %125, %128 : vector<16x16xf32>
    %130 = math.exp %129 : vector<16x16xf32>
    %cst_38 = arith.constant dense<0.000000e+00> : vector<16xf32>
    %131 = vector.multi_reduction <add>, %130, %cst_38 [1] : vector<16x16xf32> to vector<16xf32>
    %132 = vector.shape_cast %131 : vector<16xf32> to vector<16x1xf32>
    %133 = arith.truncf %130 : vector<16x16xf32> to vector<16x16xbf16>
    %cst_39 = arith.constant dense<0.000000e+00> : vector<16x8xf32>
    %134 = tpu.matmul %133, %124, %cst_39 {dimension_numbers = #tpu.dot_dimension_numbers<[1], [0], [0], [1], [0, 0, 1, 1], [], []>} : vector<16x16xbf16>, vector<16x8xbf16>, vector<16x8xf32> -> vector<16x8xf32>
    %135 = tpu.reciprocal %132 {approx = true} : vector<16x1xf32> -> vector<16x1xf32>
    %136 = vector.broadcast %135 : vector<16x1xf32> to vector<16x8xf32>
    %137 = arith.mulf %134, %136 : vector<16x8xf32>
    %138 = arith.truncf %137 : vector<16x8xf32> to vector<16x8xbf16>
    %139 = vector.extract_strided_slice %1 {offsets = [0, 56], sizes = [16, 8], strides = [1, 1]} : vector<16x64xbf16> to vector<16x8xbf16>
    %cst_40 = arith.constant 3.535160e-01 : bf16
    %140 = vector.broadcast %cst_40 : bf16 to vector<16x8xbf16>
    %141 = arith.mulf %139, %140 : vector<16x8xbf16>
    %142 = vector.extract_strided_slice %3 {offsets = [0, 56], sizes = [16, 8], strides = [1, 1]} : vector<16x64xbf16> to vector<16x8xbf16>
    %143 = vector.extract_strided_slice %5 {offsets = [0, 56], sizes = [16, 8], strides = [1, 1]} : vector<16x64xbf16> to vector<16x8xbf16>
    %cst_41 = arith.constant dense<0.000000e+00> : vector<16x16xf32>
    %144 = tpu.matmul %141, %142, %cst_41 {dimension_numbers = #tpu.dot_dimension_numbers<[1], [1], [0], [0], [0, 0, 1, 0], [], []>} : vector<16x8xbf16>, vector<16x8xbf16>, vector<16x16xf32> -> vector<16x16xf32>
    %cst_42 = arith.constant dense<0xFF800000> : vector<16xf32>
    %145 = vector.multi_reduction <maximumf>, %144, %cst_42 [1] : vector<16x16xf32> to vector<16xf32>
    %146 = vector.shape_cast %145 : vector<16xf32> to vector<16x1xf32>
    %147 = vector.broadcast %146 : vector<16x1xf32> to vector<16x16xf32>
    %148 = arith.subf %144, %147 : vector<16x16xf32>
    %149 = math.exp %148 : vector<16x16xf32>
    %cst_43 = arith.constant dense<0.000000e+00> : vector<16xf32>
    %150 = vector.multi_reduction <add>, %149, %cst_43 [1] : vector<16x16xf32> to vector<16xf32>
    %151 = vector.shape_cast %150 : vector<16xf32> to vector<16x1xf32>
    %152 = arith.truncf %149 : vector<16x16xf32> to vector<16x16xbf16>
    %cst_44 = arith.constant dense<0.000000e+00> : vector<16x8xf32>
    %153 = tpu.matmul %152, %143, %cst_44 {dimension_numbers = #tpu.dot_dimension_numbers<[1], [0], [0], [1], [0, 0, 1, 1], [], []>} : vector<16x16xbf16>, vector<16x8xbf16>, vector<16x8xf32> -> vector<16x8xf32>
    %154 = tpu.reciprocal %151 {approx = true} : vector<16x1xf32> -> vector<16x1xf32>
    %155 = vector.broadcast %154 : vector<16x1xf32> to vector<16x8xf32>
    %156 = arith.mulf %153, %155 : vector<16x8xf32>
    %157 = arith.truncf %156 : vector<16x8xf32> to vector<16x8xbf16>
    %158 = tpu.concatenate %24, %43, %62, %81, %100, %119, %138, %157 in 1 : vector<16x8xbf16>, vector<16x8xbf16>, vector<16x8xbf16>, vector<16x8xbf16>, vector<16x8xbf16>, vector<16x8xbf16>, vector<16x8xbf16>, vector<16x8xbf16> -> vector<16x64xbf16>
    %c0_45 = arith.constant 0 : index
    %c0_46 = arith.constant 0 : index
    %c0_47 = arith.constant 0 : index
    %159 = vector.load %arg2[%c0_45, %c0_46, %c0_47] : memref<1x16x64xbf16, #tpu.memory_space<vmem>>, vector<1x16x64xbf16>
    %160 = vector.shape_cast %159 : vector<1x16x64xbf16> to vector<16x64xbf16>
    %161 = vector.shape_cast %158 : vector<16x64xbf16> to vector<1x16x64xbf16>
    tpu.vector_store %arg2[%c0_45, %c0_46, %c0_47], %161 {strides = array<i32>} : memref<1x16x64xbf16, #tpu.memory_space<vmem>>, vector<1x16x64xbf16>,
    return
  }
  func.func @transform_0(%arg0: i32) -> (i32, i32, i32) {
    %c0_i32 = arith.constant 0 : i32
    %c0_i32_0 = arith.constant 0 : i32
    %c0_i32_1 = arith.constant 0 : i32
    return %arg0, %c0_i32, %c0_i32_0 : i32, i32, i32
  }
  func.func @transform_1(%arg0: i32) -> (i32, i32, i32) {
    %c0_i32 = arith.constant 0 : i32
    %c0_i32_0 = arith.constant 0 : i32
    %c0_i32_1 = arith.constant 0 : i32
    return %arg0, %c0_i32, %c0_i32_0 : i32, i32, i32
  }
}

module attributes {stable_mosaic.version = 11 : i64} {
  func.func @_matmul_bias_kernel(%arg0: i32, %arg1: i32, %arg2: i32, %arg3: memref<32x64xbf16, #tpu.memory_space<vmem>>, %arg4: memref<64x64xbf16, #tpu.memory_space<vmem>>, %arg5: memref<1x64xf32, #tpu.memory_space<vmem>>, %arg6: memref<32x64xf32, #tpu.memory_space<vmem>>, %arg7: memref<32x64xf32, #tpu.memory_space<vmem>>) attributes {dimension_semantics = [#tpu.dimension_semantics<parallel>, #tpu.dimension_semantics<parallel>, #tpu.dimension_semantics<arbitrary>], iteration_bounds = array<i64: 1, 1, 1>, scalar_prefetch = 0 : i64, scratch_operands = 1 : i64, tpu.core_type = #tpu.core_type<tc>, window_params = [{transform_indices = @transform_0, window_bounds = array<i64: 32, 64>}, {transform_indices = @transform_1, window_bounds = array<i64: 64, 64>}, {transform_indices = @transform_2, window_bounds = array<i64: 1, 64>}, {transform_indices = @transform_3, window_bounds = array<i64: 32, 64>}]} {
    %c0_i32 = arith.constant 0 : i32
    %0 = arith.cmpi eq, %arg2, %c0_i32 : i32
    %1 = arith.extui %0 : i1 to i32
    %c0_i32_0 = arith.constant 0 : i32
    %2 = arith.cmpi ne, %1, %c0_i32_0 : i32
    scf.if %2 {
      %cst_10 = arith.constant 0.000000e+00 : f32
      %12 = vector.broadcast %cst_10 : f32 to vector<32x64xf32>
      %c0_11 = arith.constant 0 : index
      %c0_12 = arith.constant 0 : index
      %13 = vector.load %arg7[%c0_11, %c0_12] : memref<32x64xf32, #tpu.memory_space<vmem>>, vector<32x64xf32>
      tpu.vector_store %arg7[%c0_11, %c0_12], %12 {strides = array<i32>} : memref<32x64xf32, #tpu.memory_space<vmem>>, vector<32x64xf32>,
    } else {
    }
    %c0 = arith.constant 0 : index
    %c0_1 = arith.constant 0 : index
    %3 = vector.load %arg7[%c0, %c0_1] : memref<32x64xf32, #tpu.memory_space<vmem>>, vector<32x64xf32>
    %c0_2 = arith.constant 0 : index
    %c0_3 = arith.constant 0 : index
    %4 = vector.load %arg3[%c0_2, %c0_3] : memref<32x64xbf16, #tpu.memory_space<vmem>>, vector<32x64xbf16>
    %c0_4 = arith.constant 0 : index
    %c0_5 = arith.constant 0 : index
    %5 = vector.load %arg4[%c0_4, %c0_5] : memref<64x64xbf16, #tpu.memory_space<vmem>>, vector<64x64xbf16>
    %cst = arith.constant dense<0.000000e+00> : vector<32x64xf32>
    %6 = tpu.matmul %4, %5, %cst {dimension_numbers = #tpu.dot_dimension_numbers<[1], [0], [0], [1], [0, 0, 1, 1], [], []>} : vector<32x64xbf16>, vector<64x64xbf16>, vector<32x64xf32> -> vector<32x64xf32>
    %7 = arith.addf %3, %6 : vector<32x64xf32>
    %c0_6 = arith.constant 0 : index
    %c0_7 = arith.constant 0 : index
    %8 = vector.load %arg7[%c0_6, %c0_7] : memref<32x64xf32, #tpu.memory_space<vmem>>, vector<32x64xf32>
    tpu.vector_store %arg7[%c0_6, %c0_7], %7 {strides = array<i32>} : memref<32x64xf32, #tpu.memory_space<vmem>>, vector<32x64xf32>,
    %c0_i32_8 = arith.constant 0 : i32
    %9 = arith.cmpi eq, %arg2, %c0_i32_8 : i32
    %10 = arith.extui %9 : i1 to i32
    %c0_i32_9 = arith.constant 0 : i32
    %11 = arith.cmpi ne, %10, %c0_i32_9 : i32
    scf.if %11 {
      %c0_10 = arith.constant 0 : index
      %c0_11 = arith.constant 0 : index
      %12 = vector.load %arg7[%c0_10, %c0_11] : memref<32x64xf32, #tpu.memory_space<vmem>>, vector<32x64xf32>
      %c0_12 = arith.constant 0 : index
      %c0_13 = arith.constant 0 : index
      %13 = vector.load %arg5[%c0_12, %c0_13] : memref<1x64xf32, #tpu.memory_space<vmem>>, vector<1x64xf32>
      %14 = vector.broadcast %13 : vector<1x64xf32> to vector<32x64xf32>
      %15 = arith.addf %12, %14 : vector<32x64xf32>
      %c0_14 = arith.constant 0 : index
      %c0_15 = arith.constant 0 : index
      %16 = vector.load %arg6[%c0_14, %c0_15] : memref<32x64xf32, #tpu.memory_space<vmem>>, vector<32x64xf32>
      tpu.vector_store %arg6[%c0_14, %c0_15], %15 {strides = array<i32>} : memref<32x64xf32, #tpu.memory_space<vmem>>, vector<32x64xf32>,
    } else {
    }
    return
  }
  func.func @transform_0(%arg0: i32, %arg1: i32, %arg2: i32) -> (i32, i32) {
    %c0_i32 = arith.constant 0 : i32
    return %arg0, %arg2 : i32, i32
  }
  func.func @transform_1(%arg0: i32, %arg1: i32, %arg2: i32) -> (i32, i32) {
    %c0_i32 = arith.constant 0 : i32
    return %arg2, %arg1 : i32, i32
  }
  func.func @transform_2(%arg0: i32, %arg1: i32, %arg2: i32) -> (i32, i32) {
    %c0_i32 = arith.constant 0 : i32
    %c0_i32_0 = arith.constant 0 : i32
    return %c0_i32, %arg1 : i32, i32
  }
  func.func @transform_3(%arg0: i32, %arg1: i32, %arg2: i32) -> (i32, i32) {
    %c0_i32 = arith.constant 0 : i32
    return %arg0, %arg1 : i32, i32
  }
}

</mosaic_0001>

<llo_original>
// kernel: attention_forward.3
$region0: #{attention_forward.3}
  #allocation0 [shape = 'u32[]', space=smem, size = 0x4, offset = 0x4, fixed_abs, tag = 'smem constant byte address 0x4 - core index']
  #allocation1 [shape = 'u32[72,128]{1,0:T(1,128)}', space=vmem, size = 0x9000, scoped, tag = 'internal scratch']
  #allocation2 [shape = 'f32[32,192]{1,0:T(8,128)}', space=vmem, size = 0x8000, scoped, tag = 'scratch operand']
  %s0 = inlined_call_operand.vmem [shape: bf16[32,64], index: 0, kind: input, shape index: {}]
  %s1 = inlined_call_operand.hbm [shape: bf16[64,192], index: 1, kind: input, shape index: {}]
  %s2 = inlined_call_operand.vmem [shape: bf16[32,192], index: 2, kind: output, shape index: {}]
  %s3 = sld [smem:[#allocation0]]
  $region30: #{attention_forward.3} parent=0
    _
  %s5 = ssub.s32 1, %s3
  %s6 = scalar_select 0, %s5, %s3
  $region1: #{attention_forward.3} parent=0
    #allocation3 [shape = 'u8[32768]{0}', space=vmem, size = 0x8000, scoped, tag = 'input window, operand 1, single buffered']
    #allocation4 [shape = 's32[1]{0}', space=sflag, size = 0x4, scoped, tag = 'scoped memory for attention_forward.3']
    %7 = vsyncpa [#allocation4], 0
    // Predicated region
    $region2: #{attention_forward.3} parent=1 // pred_check
      _
    $region3: #{attention_forward.3} parent=1 // pred_check_branch
      %9 = sbr.rel (0) target = $region5
    $region4: #{attention_forward.3} parent=1 // pred_region
      _
    $region5: #{attention_forward.3} parent=1 // pred_fallthru
      _
    // Predicated region
    $region6: #{attention_forward.3} parent=1 // pred_check
      _
    $region7: #{attention_forward.3} parent=1 // pred_check_branch
      %11 = sbr.rel (0) target = $region9
    $region8: #{attention_forward.3} parent=1 // pred_region
      %13 = vsyncadd [#allocation4], 0
      %s14 = sshll.u32 %s1, 4
      %s15 = int_to_ptr.hbm [resolvable:$true] %s14
      %s16 = sshll.u32 [#allocation3], 4
      %s17 = int_to_ptr.vmem [resolvable:$true] %s16
      %22 = dma.hbm_to_vmem [thread:$0]  %s15, 1024, %s17, [#allocation4], 128, 128, 8
    $region9: #{attention_forward.3} parent=1 // pred_fallthru
      _
    // Predicated region
    $region10: #{attention_forward.3} parent=1 // pred_check
      _
    $region11: #{attention_forward.3} parent=1 // pred_check_branch
      %24 = sbr.rel (0) target = $region13
    $region12: #{attention_forward.3} parent=1 // pred_region
      %26 = dma.done [#allocation4], 1024
    $region13: #{attention_forward.3} parent=1 // pred_fallthru
      _
    %p28 = scmp.eq.s32.totalorder 0, 0
    // Predicated region
    $region14: #{attention_forward.3} parent=1 // pred_check
      %p29 = pneg %p28
    $region15: #{attention_forward.3} parent=1 // pred_check_branch
      %31 = sbr.rel (%p29) target = $region17
    $region16: #{attention_forward.3} parent=1 // pred_region
      %32 = vst [vmem:[#allocation2] sm:$0xff] 0.0
      %vm33 = vcmask 523264
      %34 = vst.msk [vmem:[#allocation2 + $0x8] sm:$0xff] %vm33, 0.0
      %35 = vst [vmem:[#allocation2 + $0x10] sm:$0xff] 0.0
      %36 = vst.msk [vmem:[#allocation2 + $0x18] sm:$0xff] %vm33, 0.0
      %37 = vst [vmem:[#allocation2 + $0x20] sm:$0xff] 0.0
      %38 = vst.msk [vmem:[#allocation2 + $0x28] sm:$0xff] %vm33, 0.0
      %39 = vst [vmem:[#allocation2 + $0x30] sm:$0xff] 0.0
      %40 = vst.msk [vmem:[#allocation2 + $0x38] sm:$0xff] %vm33, 0.0
    $region17: #{attention_forward.3} parent=1 // pred_fallthru
      _
    %v41 = vld [vmem:[#allocation2] sm:$0xff]
    %v42 = vld [vmem:[#allocation2 + $0x8] sm:$0xff]
    %v43 = vld [vmem:[#allocation2 + $0x10] sm:$0xff]
    %v44 = vld [vmem:[#allocation2 + $0x18] sm:$0xff]
    %v45 = vld [vmem:[#allocation2 + $0x20] sm:$0xff]
    %v46 = vld [vmem:[#allocation2 + $0x28] sm:$0xff]
    %v47 = vld [vmem:[#allocation2 + $0x30] sm:$0xff]
    %v48 = vld [vmem:[#allocation2 + $0x38] sm:$0xff]
    %v49 = vld [vmem:[%s0] sm:$0xf]
    %v50 = vld [vmem:[%s0 + $0x4] sm:$0xf]
    %v51 = vld [vmem:[%s0 + $0x8] sm:$0xf]
    %v52 = vld [vmem:[%s0 + $0xc] sm:$0xf]
    %v53 = vld [vmem:[#allocation3] sm:$0xff]
    %v54 = vld [vmem:[#allocation3 + $0x8] sm:$0xff]
    %v55 = vld [vmem:[#allocation3 + $0x10] sm:$0xff]
    %v56 = vld [vmem:[#allocation3 + $0x18] sm:$0xff]
    %v57 = vld [vmem:[#allocation3 + $0x20] sm:$0xff]
    %v58 = vld [vmem:[#allocation3 + $0x28] sm:$0xff]
    %v59 = vld [vmem:[#allocation3 + $0x30] sm:$0xff]
    %v60 = vld [vmem:[#allocation3 + $0x38] sm:$0xff]
    %v65 = vunpack.c.l.b16 %v49
    %v66 = vunpack.c.l.b16 %v50
    %v67 = vunpack.c.l.b16 %v51
    %v68 = vunpack.c.l.b16 %v52
    %v69 = vpack.c.b16 %v66, %v65
    %v70 = vpack.c.b16 %v68, %v67
    %v79 = vunpack.c.l.b16 %v53
    %v80 = vunpack.c.h.b16 %v53
    %v81 = vunpack.c.l.b16 %v54
    %v82 = vunpack.c.h.b16 %v54
    %v83 = vunpack.c.l.b16 %v55
    %v84 = vunpack.c.h.b16 %v55
    %v85 = vunpack.c.l.b16 %v56
    %v86 = vunpack.c.h.b16 %v56
    %v87 = vunpack.c.l.b16 %v57
    %v88 = vunpack.c.h.b16 %v57
    %v89 = vunpack.c.l.b16 %v58
    %v90 = vunpack.c.h.b16 %v58
    %v91 = vunpack.c.l.b16 %v59
    %v92 = vunpack.c.h.b16 %v59
    %v93 = vunpack.c.l.b16 %v60
    %v94 = vunpack.c.h.b16 %v60
    %v95 = vpack.c.b16 %v81, %v79
    %v96 = vpack.c.b16 %v82, %v80
    %v97 = vpack.c.b16 %v85, %v83
    %v98 = vpack.c.b16 %v86, %v84
    %v99 = vpack.c.b16 %v89, %v87
    %v100 = vpack.c.b16 %v90, %v88
    %v101 = vpack.c.b16 %v93, %v91
    %v102 = vpack.c.b16 %v94, %v92
    %vm111 = vcmask 523264
    %v113 = vsel %vm111, %v69, 0
    %v116 = vsel %vm111, %v70, 0
    %118 = vmatpush.bf16.msra.mxu0 0
    %119 = vmatpush.bf16.msra.mxu0 0
    %120 = vmatpush.bf16.msra.mxu0 0
    %121 = vmatpush.bf16.msra.mxu0 0
    %122 = vmatpush.bf16.msra.mxu0 %v101
    %123 = vmatpush.bf16.msra.mxu0 %v99
    %124 = vmatpush.bf16.msra.mxu0 %v97
    %125 = vmatpush.bf16.msra.mxu0 %v95
    %126 = vmatmul.bf16.gmra.mxu0 %v113
    %v127 = vpop.f32.mrf.mxu0
    %v128 = vadd.f32 0.0, %v127
    %v129 = vpop.f32.mrf.mxu0
    %v130 = vadd.f32 0.0, %v129
    %131 = vmatmul.bf16.gmra.mxu0 %v116
    %v132 = vpop.f32.mrf.mxu0
    %v133 = vadd.f32 0.0, %v132
    %v134 = vpop.f32.mrf.mxu0
    %v135 = vadd.f32 0.0, %v134
    %136 = vdwg.mxu0
    %137 = vmatpush.bf16.msra.mxu0 0
    %138 = vmatpush.bf16.msra.mxu0 0
    %139 = vmatpush.bf16.msra.mxu0 0
    %140 = vmatpush.bf16.msra.mxu0 0
    %141 = vmatpush.bf16.msra.mxu0 %v102
    %142 = vmatpush.bf16.msra.mxu0 %v100
    %143 = vmatpush.bf16.msra.mxu0 %v98
    %144 = vmatpush.bf16.msra.mxu0 %v96
    %145 = vmatmul.bf16.gmra.mxu0 %v113
    %v146 = vpop.f32.mrf.mxu0
    %v147 = vadd.f32 0.0, %v146
    %v148 = vpop.f32.mrf.mxu0
    %v149 = vadd.f32 0.0, %v148
    %150 = vmatmul.bf16.gmra.mxu0 %v116
    %v151 = vpop.f32.mrf.mxu0
    %v152 = vadd.f32 0.0, %v151
    %v153 = vpop.f32.mrf.mxu0
    %v154 = vadd.f32 0.0, %v153
    %155 = vdwg.mxu0
    %v156 = vadd.f32 %v41, %v128
    %v157 = vadd.f32 %v42, %v147
    %v158 = vadd.f32 %v43, %v130
    %v159 = vadd.f32 %v44, %v149
    %v160 = vadd.f32 %v45, %v133
    %v161 = vadd.f32 %v46, %v152
    %v162 = vadd.f32 %v47, %v135
    %v163 = vadd.f32 %v48, %v154
    %164 = vst [vmem:[#allocation2] sm:$0xff] %v156
    %165 = vst.msk [vmem:[#allocation2 + $0x8] sm:$0xff] %vm111, %v157
    %166 = vst [vmem:[#allocation2 + $0x10] sm:$0xff] %v158
    %167 = vst.msk [vmem:[#allocation2 + $0x18] sm:$0xff] %vm111, %v159
    %168 = vst [vmem:[#allocation2 + $0x20] sm:$0xff] %v160
    %169 = vst.msk [vmem:[#allocation2 + $0x28] sm:$0xff] %vm111, %v161
    %170 = vst [vmem:[#allocation2 + $0x30] sm:$0xff] %v162
    %171 = vst.msk [vmem:[#allocation2 + $0x38] sm:$0xff] %vm111, %v163
    // Predicated region
    $region18: #{attention_forward.3} parent=1 // pred_check
      %p172 = pneg %p28
    $region19: #{attention_forward.3} parent=1 // pred_check_branch
      %174 = sbr.rel (%p172) target = $region21
    $region20: #{attention_forward.3} parent=1 // pred_region
      %v175 = vld [vmem:[#allocation2] sm:$0xff]
      %v176 = vld [vmem:[#allocation2 + $0x8] sm:$0xff]
      %v177 = vld [vmem:[#allocation2 + $0x10] sm:$0xff]
      %v178 = vld [vmem:[#allocation2 + $0x18] sm:$0xff]
      %v179 = vld [vmem:[#allocation2 + $0x20] sm:$0xff]
      %v180 = vld [vmem:[#allocation2 + $0x28] sm:$0xff]
      %v181 = vld [vmem:[#allocation2 + $0x30] sm:$0xff]
      %v182 = vld [vmem:[#allocation2 + $0x38] sm:$0xff]
      %v183 = vpack.c.bf16 %v176, %v175
      %v184 = vpack.c.bf16 %v178, %v177
      %v185 = vpack.c.bf16 %v180, %v179
      %v186 = vpack.c.bf16 %v182, %v181
      %vm187 = vcmask 1043456
      %vm188 = vcmask 523268
      %vm189 = vmor %vm188, %vm187
      %190 = vst.msk [vmem:[%s2] sm:$0xff] %vm189, %v183
      %191 = vst.msk [vmem:[%s2 + $0x8] sm:$0xff] %vm189, %v184
      %192 = vst.msk [vmem:[%s2 + $0x10] sm:$0xff] %vm189, %v185
      %193 = vst.msk [vmem:[%s2 + $0x18] sm:$0xff] %vm189, %v186
    $region21: #{attention_forward.3} parent=1 // pred_fallthru
      _
    // Predicated region
    $region22: #{attention_forward.3} parent=1 // pred_check
      _
    $region23: #{attention_forward.3} parent=1 // pred_check_branch
      %195 = sbr.rel (0) target = $region25
    $region24: #{attention_forward.3} parent=1 // pred_region
      _
    $region25: #{attention_forward.3} parent=1 // pred_fallthru
      _
    // Predicated region
    $region26: #{attention_forward.3} parent=1 // pred_check
      _
    $region27: #{attention_forward.3} parent=1 // pred_check_branch
      %197 = sbr.rel (0) target = $region29
    $region28: #{attention_forward.3} parent=1 // pred_region
      _
    $region29: #{attention_forward.3} parent=1 // pred_fallthru
      _
    %198 = vsyncpa [#allocation4], 1

// kernel: attention_forward.5
$region0: #{attention_forward.5}
  #allocation0 [shape = 'u32[]', space=smem, size = 0x4, offset = 0x4, fixed_abs, tag = 'smem constant byte address 0x4 - core index']
  #allocation1 [shape = 'u32[72,128]{1,0:T(1,128)}', space=vmem, size = 0x9000, scoped, tag = 'internal scratch']
  #allocation2 [shape = 'f32[32,64]{1,0:T(8,128)}', space=vmem, size = 0x4000, scoped, tag = 'scratch operand']
  %s0 = inlined_call_operand.vmem [shape: bf16[32,64], index: 0, kind: input, shape index: {}]
  %s1 = inlined_call_operand.vmem [shape: bf16[64,64], index: 1, kind: input, shape index: {}]
  %s2 = inlined_call_operand.vmem [shape: f32[1,64], index: 2, kind: input, shape index: {}]
  %s3 = inlined_call_operand.hbm [shape: f32[32,64], index: 3, kind: output, shape index: {}]
  %s4 = sld [smem:[#allocation0]]
  $region30: #{attention_forward.5} parent=0
    _
  %s6 = ssub.s32 1, %s4
  %s7 = scalar_select 0, %s6, %s4
  $region1: #{attention_forward.5} parent=0
    #allocation3 [shape = 'u8[16384]{0}', space=vmem, size = 0x4000, scoped, tag = 'output window, operand 0, single buffered']
    #allocation4 [shape = 's32[1]{0}', space=sflag, size = 0x4, scoped, tag = 'scoped memory for attention_forward.5']
    %8 = vsyncpa [#allocation4], 0
    // Predicated region
    $region2: #{attention_forward.5} parent=1 // pred_check
      _
    $region3: #{attention_forward.5} parent=1 // pred_check_branch
      %10 = sbr.rel (0) target = $region5
    $region4: #{attention_forward.5} parent=1 // pred_region
      _
    $region5: #{attention_forward.5} parent=1 // pred_fallthru
      _
    // Predicated region
    $region6: #{attention_forward.5} parent=1 // pred_check
      _
    $region7: #{attention_forward.5} parent=1 // pred_check_branch
      %12 = sbr.rel (0) target = $region9
    $region8: #{attention_forward.5} parent=1 // pred_region
      _
    $region9: #{attention_forward.5} parent=1 // pred_fallthru
      _
    // Predicated region
    $region10: #{attention_forward.5} parent=1 // pred_check
      _
    $region11: #{attention_forward.5} parent=1 // pred_check_branch
      %14 = sbr.rel (0) target = $region13
    $region12: #{attention_forward.5} parent=1 // pred_region
      _
    $region13: #{attention_forward.5} parent=1 // pred_fallthru
      _
    %p16 = scmp.eq.s32.totalorder 0, 0
    // Predicated region
    $region14: #{attention_forward.5} parent=1 // pred_check
      %p17 = pneg %p16
    $region15: #{attention_forward.5} parent=1 // pred_check_branch
      %19 = sbr.rel (%p17) target = $region17
    $region16: #{attention_forward.5} parent=1 // pred_region
      %vm20 = vcmask 523264
      %21 = vst.msk [vmem:[#allocation2] sm:$0xff] %vm20, 0.0
      %22 = vst.msk [vmem:[#allocation2 + $0x8] sm:$0xff] %vm20, 0.0
      %23 = vst.msk [vmem:[#allocation2 + $0x10] sm:$0xff] %vm20, 0.0
      %24 = vst.msk [vmem:[#allocation2 + $0x18] sm:$0xff] %vm20, 0.0
    $region17: #{attention_forward.5} parent=1 // pred_fallthru
      _
    %v25 = vld [vmem:[#allocation2] sm:$0xff]
    %v26 = vld [vmem:[#allocation2 + $0x8] sm:$0xff]
    %v27 = vld [vmem:[#allocation2 + $0x10] sm:$0xff]
    %v28 = vld [vmem:[#allocation2 + $0x18] sm:$0xff]
    %v29 = vld [vmem:[%s0] sm:$0xf]
    %v30 = vld [vmem:[%s0 + $0x4] sm:$0xf]
    %v31 = vld [vmem:[%s0 + $0x8] sm:$0xf]
    %v32 = vld [vmem:[%s0 + $0xc] sm:$0xf]
    %v33 = vld [vmem:[%s1] sm:$0xf]
    %v34 = vld [vmem:[%s1 + $0x4] sm:$0xf]
    %v35 = vld [vmem:[%s1 + $0x8] sm:$0xf]
    %v36 = vld [vmem:[%s1 + $0xc] sm:$0xf]
    %v37 = vld [vmem:[%s1 + $0x10] sm:$0xf]
    %v38 = vld [vmem:[%s1 + $0x14] sm:$0xf]
    %v39 = vld [vmem:[%s1 + $0x18] sm:$0xf]
    %v40 = vld [vmem:[%s1 + $0x1c] sm:$0xf]
    %v45 = vunpack.c.l.b16 %v29
    %v46 = vunpack.c.l.b16 %v30
    %v47 = vunpack.c.l.b16 %v31
    %v48 = vunpack.c.l.b16 %v32
    %v49 = vpack.c.b16 %v46, %v45
    %v50 = vpack.c.b16 %v48, %v47
    %v59 = vunpack.c.l.b16 %v33
    %v60 = vunpack.c.l.b16 %v34
    %v61 = vunpack.c.l.b16 %v35
    %v62 = vunpack.c.l.b16 %v36
    %v63 = vunpack.c.l.b16 %v37
    %v64 = vunpack.c.l.b16 %v38
    %v65 = vunpack.c.l.b16 %v39
    %v66 = vunpack.c.l.b16 %v40
    %v67 = vpack.c.b16 %v60, %v59
    %v68 = vpack.c.b16 %v62, %v61
    %v69 = vpack.c.b16 %v64, %v63
    %v70 = vpack.c.b16 %v66, %v65
    %vm75 = vcmask 523264
    %v77 = vsel %vm75, %v49, 0
    %v80 = vsel %vm75, %v50, 0
    %82 = vmatpush.bf16.msra.mxu0 0
    %83 = vmatpush.bf16.msra.mxu0 0
    %84 = vmatpush.bf16.msra.mxu0 0
    %85 = vmatpush.bf16.msra.mxu0 0
    %86 = vmatpush.bf16.msra.mxu0 %v70
    %87 = vmatpush.bf16.msra.mxu0 %v69
    %88 = vmatpush.bf16.msra.mxu0 %v68
    %89 = vmatpush.bf16.msra.mxu0 %v67
    %90 = vmatmul.bf16.gmra.mxu0 %v77
    %v91 = vpop.f32.mrf.mxu0
    %v92 = vadd.f32 0.0, %v91
    %v93 = vpop.f32.mrf.mxu0
    %v94 = vadd.f32 0.0, %v93
    %95 = vmatmul.bf16.gmra.mxu0 %v80
    %v96 = vpop.f32.mrf.mxu0
    %v97 = vadd.f32 0.0, %v96
    %v98 = vpop.f32.mrf.mxu0
    %v99 = vadd.f32 0.0, %v98
    %100 = vdwg.mxu0
    %v101 = vadd.f32 %v25, %v92
    %v102 = vadd.f32 %v26, %v94
    %v103 = vadd.f32 %v27, %v97
    %v104 = vadd.f32 %v28, %v99
    %105 = vst.msk [vmem:[#allocation2] sm:$0xff] %vm75, %v101
    %106 = vst.msk [vmem:[#allocation2 + $0x8] sm:$0xff] %vm75, %v102
    %107 = vst.msk [vmem:[#allocation2 + $0x10] sm:$0xff] %vm75, %v103
    %108 = vst.msk [vmem:[#allocation2 + $0x18] sm:$0xff] %vm75, %v104
    // Predicated region
    $region18: #{attention_forward.5} parent=1 // pred_check
      %p109 = pneg %p16
    $region19: #{attention_forward.5} parent=1 // pred_check_branch
      %111 = sbr.rel (%p109) target = $region21
    $region20: #{attention_forward.5} parent=1 // pred_region
      %v112 = vld [vmem:[#allocation2] sm:$0xff]
      %v113 = vld [vmem:[#allocation2 + $0x8] sm:$0xff]
      %v114 = vld [vmem:[#allocation2 + $0x10] sm:$0xff]
      %v115 = vld [vmem:[#allocation2 + $0x18] sm:$0xff]
      %v116 = vld [vmem:[%s2] sm:$0x1]
      %v118 = vperm.slane %v116, 0
      %v120 = vadd.f32 %v112, %v118
      %v121 = vadd.f32 %v113, %v118
      %v122 = vadd.f32 %v114, %v118
      %v123 = vadd.f32 %v115, %v118
      %124 = vst.msk [vmem:[#allocation3] sm:$0xff] %vm75, %v120
      %125 = vst.msk [vmem:[#allocation3 + $0x8] sm:$0xff] %vm75, %v121
      %126 = vst.msk [vmem:[#allocation3 + $0x10] sm:$0xff] %vm75, %v122
      %127 = vst.msk [vmem:[#allocation3 + $0x18] sm:$0xff] %vm75, %v123
    $region21: #{attention_forward.5} parent=1 // pred_fallthru
      _
    // Predicated region
    $region22: #{attention_forward.5} parent=1 // pred_check
      _
    $region23: #{attention_forward.5} parent=1 // pred_check_branch
      %129 = sbr.rel (0) target = $region25
    $region24: #{attention_forward.5} parent=1 // pred_region
      %131 = vsyncadd [#allocation4], 0
      %s132 = sshll.u32 [#allocation3], 4
      %s133 = int_to_ptr.vmem [resolvable:$true] %s132
      %s134 = sshll.u32 %s3, 4
      %s135 = int_to_ptr.hbm [resolvable:$true] %s134
      %140 = dma.vmem_to_hbm [thread:$0]  %s133, 512, %s135, [#allocation4], 128, 128, 8
    $region25: #{attention_forward.5} parent=1 // pred_fallthru
      _
    // Predicated region
    $region26: #{attention_forward.5} parent=1 // pred_check
      _
    $region27: #{attention_forward.5} parent=1 // pred_check_branch
      %142 = sbr.rel (0) target = $region29
    $region28: #{attention_forward.5} parent=1 // pred_region
      %144 = dma.done [#allocation4], 512
    $region29: #{attention_forward.5} parent=1 // pred_fallthru
      _
    %145 = vsyncpa [#allocation4], 1

// kernel: attention_forward.4
$region0: #{attention_forward.4}
  #allocation0 [shape = 'u32[]', space=smem, size = 0x4, offset = 0x4, fixed_abs, tag = 'smem constant byte address 0x4 - core index']
  #allocation1 [shape = 'u32[72,128]{1,0:T(1,128)}', space=vmem, size = 0x9000, scoped, tag = 'internal scratch']
  %s0 = inlined_call_operand.vmem [shape: bf16[2,16,192], index: 0, kind: input, shape index: {}]
  %s1 = inlined_call_operand.vmem [shape: bf16[2,16,64], index: 1, kind: output, shape index: {}]
  %s2 = sld [smem:[#allocation0]]
  $region37: #{attention_forward.4} parent=0
    _
  %s4 = ssub.s32 1, %s2
  %s5 = scalar_select 0, %s4, %s2
  loop: start=0, step=1, limit=4
  $region2: #{attention_forward.4} parent=0 // loop_pre_header
    _
  $region3: #{attention_forward.4} parent=0 // loop_header
    %s7 = sphi 0, %s11
    %p8 = scmp.ge.s32.totalorder %s7, 4
    %s17 = sphi 0, %s19
    %s20 = sphi 0, %s17
    %s21 = sphi 0, %s20
    %s37 = sphi 0, %s21
    %s43 = sphi 0, %s45
    %s46 = sphi 0, %s43
    %s47 = sphi 0, %s46
    %s63 = sphi 0, %s47
  $region4: #{attention_forward.4} parent=0 // loop_header_branch
    %10 = sbr.rel (%p8) target = $region8
  $region5: #{attention_forward.4} parent=0 // loop_body
    %s12 = ssub.s32 %s7, 1
    %s13 = ssub.s32 %s7, 2
    %s14 = sadd.s32 %s7, 1
    %s15 = ssub.s32 %s7, %s14
    %p16 = scmp.eq.s32.totalorder %s15, 0
    %s18 = sadd.s32 %s17, 1
    %s19 = scalar_select %p16, %s17, %s18
    %p22 = pneg %p16
    %p23 = scmp.eq.s32.totalorder %s7, 1
    %p24 = por %p22, %p23
    %p25 = scmp.ne.s32.totalorder %s17, %s20
    %p26 = scmp.eq.s32.totalorder %s7, 0
    %p27 = por %p25, %p26
    %p28 = scmp.ne.s32.totalorder %s17, %s20
    %p29 = scmp.eq.s32.totalorder %s12, 1
    %p30 = por %p28, %p29
    %p31 = scmp.ne.s32.totalorder %s20, %s21
    %p32 = scmp.eq.s32.totalorder %s12, 0
    %p33 = por %p31, %p32
    %p34 = scmp.ne.s32.totalorder %s20, %s21
    %p35 = scmp.eq.s32.totalorder %s13, 1
    %p36 = por %p34, %p35
    %p38 = scmp.ne.s32.totalorder %s21, %s37
    %p39 = scmp.eq.s32.totalorder %s13, 0
    %p40 = por %p38, %p39
    %s41 = ssub.s32 %s7, %s14
    %p42 = scmp.eq.s32.totalorder %s41, 0
    %s44 = sadd.s32 %s43, 1
    %s45 = scalar_select %p42, %s43, %s44
    %p48 = pneg %p42
    %p49 = scmp.eq.s32.totalorder %s7, 1
    %p50 = por %p48, %p49
    %p51 = scmp.ne.s32.totalorder %s43, %s46
    %p52 = scmp.eq.s32.totalorder %s7, 0
    %p53 = por %p51, %p52
    %p54 = scmp.ne.s32.totalorder %s43, %s46
    %p55 = scmp.eq.s32.totalorder %s12, 1
    %p56 = por %p54, %p55
    %p57 = scmp.ne.s32.totalorder %s46, %s47
    %p58 = scmp.eq.s32.totalorder %s12, 0
    %p59 = por %p57, %p58
    %p60 = scmp.ne.s32.totalorder %s46, %s47
    %p61 = scmp.eq.s32.totalorder %s13, 1
    %p62 = por %p60, %p61
    %p64 = scmp.ne.s32.totalorder %s47, %s63
    %p65 = scmp.eq.s32.totalorder %s13, 0
    %p66 = por %p64, %p65
    %p67 = scmp.le.s32.totalorder 1, %s7
    %p68 = scmp.lt.s32.totalorder %s7, 3
    %p69 = pnand %p67, %p68
    %p70 = pneg %p69
    // Predicated region
    $region9: #{attention_forward.4} parent=5 // pred_check
      _
    $region10: #{attention_forward.4} parent=5 // pred_check_branch
      %72 = sbr.rel (%p69) target = $region12
    $region11: #{attention_forward.4} parent=5 // pred_region
      %s73 = ssub.s32 %s7, 1
    $region12: #{attention_forward.4} parent=5 // pred_fallthru
      _
    %p74 = scmp.lt.s32.totalorder %s7, 2
    // Predicated region
    $region13: #{attention_forward.4} parent=5 // pred_check
      %p75 = pneg %p74
    $region14: #{attention_forward.4} parent=5 // pred_check_branch
      %77 = sbr.rel (%p75) target = $region16
    $region15: #{attention_forward.4} parent=5 // pred_region
      // Predicated region
      $region17: #{attention_forward.4} parent=15 // pred_check
        %p78 = pneg %p27
      $region18: #{attention_forward.4} parent=15 // pred_check_branch
        %80 = sbr.rel (%p78) target = $region20
      $region19: #{attention_forward.4} parent=15 // pred_region
        %p81 = scmp.lt.s32.totalorder %s7, 1
        %s82 = scalar_select %p81, %s7, 1
        %s83 = smul.addr %s82, 4
        %s84 = smul.addr %s83, 4
        %s85 = scalar_lea.vmem %s0, %s84
      $region20: #{attention_forward.4} parent=15 // pred_fallthru
        _
    $region16: #{attention_forward.4} parent=5 // pred_fallthru
      _
    %p86 = scmp.le.s32.totalorder 1, %s7
    %p87 = scmp.lt.s32.totalorder %s7, 3
    %p88 = pnand %p86, %p87
    %p89 = pneg %p88
    // Predicated region
    $region21: #{attention_forward.4} parent=5 // pred_check
      _
    $region22: #{attention_forward.4} parent=5 // pred_check_branch
      %91 = sbr.rel (%p88) target = $region24
    $region23: #{attention_forward.4} parent=5 // pred_region
      %s92 = ssub.s32 %s7, 1
      %p93 = scmp.lt.s32.totalorder %s12, 1
      %s94 = scalar_select %p93, %s12, 1
      %s95 = smul.addr %s94, 4
      %s96 = smul.addr %s95, 4
      %s97 = scalar_lea.vmem %s0, %s96
      %p98 = pneg %p33
      %p99 = pneg %p30
      %p100 = pneg %p59
      %p101 = pneg %p56
      %p102 = scmp.lt.s32.totalorder %s12, 1
      %s103 = scalar_select %p102, %s12, 1
      %s104 = smul.addr %s103, 2
      %s105 = smul.addr %s104, 4
      %s106 = scalar_lea.vmem %s1, %s105
      %p107 = scmp.lt.s32.totalorder %s12, 1
      %s108 = scalar_select %p107, %s12, 1
      %s109 = smul.addr %s108, 4
      %s110 = smul.addr %s109, 4
      %s111 = scalar_lea.vmem %s0, %s110
      %p112 = scmp.lt.s32.totalorder %s12, 1
      %s113 = scalar_select %p112, %s12, 1
      %s114 = smul.addr %s113, 2
      %s115 = smul.addr %s114, 4
      %s116 = scalar_lea.vmem %s1, %s115
      %v118 = vld [vmem:[%s111] sm:$0xf]
      %v119 = vld [vmem:[%s111 + $0x8] sm:$0xf]
      %v120 = vld [vmem:[%s111 + $0x4] sm:$0xf]
      %v121 = vld [vmem:[%s111 + $0xc] sm:$0xf]
      %v122 = vunpack.c.l.bf16 %v118
      %v123 = vunpack.c.l.bf16 %v119
      %v124 = vmul.f32 %v122, 0.35351563
      %v125 = vmul.f32 %v123, 0.35351563
      %v126 = vpack.c.bf16 %v125, %v124
      %v129 = vunpack.c.l.b16 %v118
      %v130 = vunpack.c.l.b16 %v119
      %v131 = vpack.c.b16 %v130, %v129
      %132 = vrot.lane.b32.xlu0 %v131, 64
      %v133 = vpop.permute.xlu0 %132
      %vm134 = vcmask 64512
      %v136 = vsel %vm134, %v126, 0
      %v139 = vsel %vm134, %v133, 0
      %141 = vmatpush.bf16.xpose.msra.mxu0 0
      %142 = vmatpush.bf16.xpose.msra.mxu0 0
      %143 = vmatpush.bf16.xpose.msra.mxu0 0
      %144 = vmatpush.bf16.xpose.msra.mxu0 0
      %145 = vmatpush.bf16.xpose.msra.mxu0 0
      %146 = vmatpush.bf16.xpose.msra.mxu0 0
      %147 = vmatpush.bf16.xpose.msra.mxu0 0
      %148 = vmatpush.bf16.xpose.msra.mxu0 %v139
      %149 = vmatmul.bf16.gmra.mxu0 %v136
      %v150 = vpop.f32.mrf.mxu0
      %v151 = vadd.f32 0.0, %v150
      %v152 = vpop.f32.mrf.mxu0
      %v153 = vadd.f32 0.0, %v152
      %154 = vdwg.mxu0
      %vm155 = vcmask 130048
      %v156 = vsel %vm155, %v151, -inf
      %157 = vmax.xlane.f32.xlu0 %v156
      %v158 = vpop.xlane.xlu0 %157
      %v159 = vsel %vm155, %v153, -inf
      %160 = vmax.xlane.f32.xlu0 %v159
      %v161 = vpop.xlane.xlu0 %160
      %v162 = vsub.f32 %v151, %v158
      %v163 = vsub.f32 %v153, %v161
      %v164 = vmul.f32 %v162, 1.442695
      %v165 = vpow.pop %v164
      %v166 = vmul.f32 %v163, 1.442695
      %v167 = vpow.pop %v166
      %v168 = vsel %vm155, %v165, 0.0
      %169 = vadd.xlane.f32.xlu0 %v168
      %v170 = vpop.xlane.xlu0 %169
      %v171 = vsel %vm155, %v167, 0.0
      %172 = vadd.xlane.f32.xlu0 %v171
      %v173 = vpop.xlane.xlu0 %172
      %v174 = vpack.c.bf16 %v167, %v165
      %v177 = vunpack.c.l.b16 %v120
      %v178 = vunpack.c.l.b16 %v121
      %v179 = vpack.c.b16 %v178, %v177
      %v182 = vsel %vm155, %v174, 0
      %184 = vmatpush.bf16.msra.mxu0 0
      %185 = vmatpush.bf16.msra.mxu0 0
      %186 = vmatpush.bf16.msra.mxu0 0
      %187 = vmatpush.bf16.msra.mxu0 0
      %188 = vmatpush.bf16.msra.mxu0 0
      %189 = vmatpush.bf16.msra.mxu0 0
      %190 = vmatpush.bf16.msra.mxu0 0
      %191 = vmatpush.bf16.msra.mxu0 %v179
      %192 = vmatmul.bf16.gmra.mxu0 %v182
      %v193 = vpop.f32.mrf.mxu0
      %v194 = vadd.f32 0.0, %v193
      %v195 = vpop.f32.mrf.mxu0
      %v196 = vadd.f32 0.0, %v195
      %197 = vdwg.mxu0
      %v198 = vrcp.pop %v170
      %v199 = vrcp.pop %v173
      %v200 = vmul.f32 %v194, %v198
      %v201 = vmul.f32 %v196, %v199
      %v202 = vpack.c.bf16 %v200, %v200
      %v203 = vpack.c.bf16 %v201, %v201
      %205 = vrot.lane.b32.xlu0 %v126, 120
      %v206 = vpop.permute.xlu0 %205
      %207 = vrot.lane.b32.xlu0 %v131, 56
      %v208 = vpop.permute.xlu0 %207
      %v210 = vsel %vm134, %v206, 0
      %v213 = vsel %vm134, %v208, 0
      %215 = vmatpush.bf16.xpose.msra.mxu0 0
      %216 = vmatpush.bf16.xpose.msra.mxu0 0
      %217 = vmatpush.bf16.xpose.msra.mxu0 0
      %218 = vmatpush.bf16.xpose.msra.mxu0 0
      %219 = vmatpush.bf16.xpose.msra.mxu0 0
      %220 = vmatpush.bf16.xpose.msra.mxu0 0
      %221 = vmatpush.bf16.xpose.msra.mxu0 0
      %222 = vmatpush.bf16.xpose.msra.mxu0 %v213
      %223 = vmatmul.bf16.gmra.mxu0 %v210
      %v224 = vpop.f32.mrf.mxu0
      %v225 = vadd.f32 0.0, %v224
      %v226 = vpop.f32.mrf.mxu0
      %v227 = vadd.f32 0.0, %v226
      %228 = vdwg.mxu0
      %v229 = vsel %vm155, %v225, -inf
      %230 = vmax.xlane.f32.xlu0 %v229
      %v231 = vpop.xlane.xlu0 %230
      %v232 = vsel %vm155, %v227, -inf
      %233 = vmax.xlane.f32.xlu0 %v232
      %v234 = vpop.xlane.xlu0 %233
      %v235 = vsub.f32 %v225, %v231
      %v236 = vsub.f32 %v227, %v234
      %v237 = vmul.f32 %v235, 1.442695
      %v238 = vpow.pop %v237
      %v239 = vmul.f32 %v236, 1.442695
      %v240 = vpow.pop %v239
      %v241 = vsel %vm155, %v238, 0.0
      %242 = vadd.xlane.f32.xlu0 %v241
      %v243 = vpop.xlane.xlu0 %242
      %v244 = vsel %vm155, %v240, 0.0
      %245 = vadd.xlane.f32.xlu0 %v244
      %v246 = vpop.xlane.xlu0 %245
      %v247 = vpack.c.bf16 %v240, %v238
      %248 = vrot.lane.b32.xlu0 %v179, 120
      %v249 = vpop.permute.xlu0 %248
      %v252 = vsel %vm155, %v247, 0
      %254 = vmatpush.bf16.msra.mxu0 0
      %255 = vmatpush.bf16.msra.mxu0 0
      %256 = vmatpush.bf16.msra.mxu0 0
      %257 = vmatpush.bf16.msra.mxu0 0
      %258 = vmatpush.bf16.msra.mxu0 0
      %259 = vmatpush.bf16.msra.mxu0 0
      %260 = vmatpush.bf16.msra.mxu0 0
      %261 = vmatpush.bf16.msra.mxu0 %v249
      %262 = vmatmul.bf16.gmra.mxu0 %v252
      %v263 = vpop.f32.mrf.mxu0
      %v264 = vadd.f32 0.0, %v263
      %v265 = vpop.f32.mrf.mxu0
      %v266 = vadd.f32 0.0, %v265
      %267 = vdwg.mxu0
      %v268 = vrcp.pop %v243
      %v269 = vrcp.pop %v246
      %v270 = vmul.f32 %v264, %v268
      %v271 = vmul.f32 %v266, %v269
      %v272 = vpack.c.bf16 %v270, %v270
      %v273 = vpack.c.bf16 %v271, %v271
      %274 = vrot.lane.b32.xlu0 %v126, 112
      %v275 = vpop.permute.xlu0 %274
      %276 = vrot.lane.b32.xlu0 %v131, 48
      %v277 = vpop.permute.xlu0 %276
      %v279 = vsel %vm134, %v275, 0
      %v282 = vsel %vm134, %v277, 0
      %284 = vmatpush.bf16.xpose.msra.mxu0 0
      %285 = vmatpush.bf16.xpose.msra.mxu0 0
      %286 = vmatpush.bf16.xpose.msra.mxu0 0
      %287 = vmatpush.bf16.xpose.msra.mxu0 0
      %288 = vmatpush.bf16.xpose.msra.mxu0 0
      %289 = vmatpush.bf16.xpose.msra.mxu0 0
      %290 = vmatpush.bf16.xpose.msra.mxu0 0
      %291 = vmatpush.bf16.xpose.msra.mxu0 %v282
      %292 = vmatmul.bf16.gmra.mxu0 %v279
      %v293 = vpop.f32.mrf.mxu0
      %v294 = vadd.f32 0.0, %v293
      %v295 = vpop.f32.mrf.mxu0
      %v296 = vadd.f32 0.0, %v295
      %297 = vdwg.mxu0
      %v298 = vsel %vm155, %v294, -inf
      %299 = vmax.xlane.f32.xlu0 %v298
      %v300 = vpop.xlane.xlu0 %299
      %v301 = vsel %vm155, %v296, -inf
      %302 = vmax.xlane.f32.xlu0 %v301
      %v303 = vpop.xlane.xlu0 %302
      %v304 = vsub.f32 %v294, %v300
      %v305 = vsub.f32 %v296, %v303
      %v306 = vmul.f32 %v304, 1.442695
      %v307 = vpow.pop %v306
      %v308 = vmul.f32 %v305, 1.442695
      %v309 = vpow.pop %v308
      %v310 = vsel %vm155, %v307, 0.0
      %311 = vadd.xlane.f32.xlu0 %v310
      %v312 = vpop.xlane.xlu0 %311
      %v313 = vsel %vm155, %v309, 0.0
      %314 = vadd.xlane.f32.xlu0 %v313
      %v315 = vpop.xlane.xlu0 %314
      %v316 = vpack.c.bf16 %v309, %v307
      %317 = vrot.lane.b32.xlu0 %v179, 112
      %v318 = vpop.permute.xlu0 %317
      %v321 = vsel %vm155, %v316, 0
      %323 = vmatpush.bf16.msra.mxu0 0
      %324 = vmatpush.bf16.msra.mxu0 0
      %325 = vmatpush.bf16.msra.mxu0 0
      %326 = vmatpush.bf16.msra.mxu0 0
      %327 = vmatpush.bf16.msra.mxu0 0
      %328 = vmatpush.bf16.msra.mxu0 0
      %329 = vmatpush.bf16.msra.mxu0 0
      %330 = vmatpush.bf16.msra.mxu0 %v318
      %331 = vmatmul.bf16.gmra.mxu0 %v321
      %v332 = vpop.f32.mrf.mxu0
      %v333 = vadd.f32 0.0, %v332
      %v334 = vpop.f32.mrf.mxu0
      %v335 = vadd.f32 0.0, %v334
      %336 = vdwg.mxu0
      %v337 = vrcp.pop %v312
      %v338 = vrcp.pop %v315
      %v339 = vmul.f32 %v333, %v337
      %v340 = vmul.f32 %v335, %v338
      %v341 = vpack.c.bf16 %v339, %v339
      %v342 = vpack.c.bf16 %v340, %v340
      %343 = vrot.lane.b32.xlu0 %v126, 104
      %v344 = vpop.permute.xlu0 %343
      %345 = vrot.lane.b32.xlu0 %v131, 40
      %v346 = vpop.permute.xlu0 %345
      %v348 = vsel %vm134, %v344, 0
      %v351 = vsel %vm134, %v346, 0
      %353 = vmatpush.bf16.xpose.msra.mxu0 0
      %354 = vmatpush.bf16.xpose.msra.mxu0 0
      %355 = vmatpush.bf16.xpose.msra.mxu0 0
      %356 = vmatpush.bf16.xpose.msra.mxu0 0
      %357 = vmatpush.bf16.xpose.msra.mxu0 0
      %358 = vmatpush.bf16.xpose.msra.mxu0 0
      %359 = vmatpush.bf16.xpose.msra.mxu0 0
      %360 = vmatpush.bf16.xpose.msra.mxu0 %v351
      %361 = vmatmul.bf16.gmra.mxu0 %v348
      %v362 = vpop.f32.mrf.mxu0
      %v363 = vadd.f32 0.0, %v362
      %v364 = vpop.f32.mrf.mxu0
      %v365 = vadd.f32 0.0, %v364
      %366 = vdwg.mxu0
      %v367 = vsel %vm155, %v363, -inf
      %368 = vmax.xlane.f32.xlu0 %v367
      %v369 = vpop.xlane.xlu0 %368
      %v370 = vsel %vm155, %v365, -inf
      %371 = vmax.xlane.f32.xlu0 %v370
      %v372 = vpop.xlane.xlu0 %371
      %v373 = vsub.f32 %v363, %v369
      %v374 = vsub.f32 %v365, %v372
      %v375 = vmul.f32 %v373, 1.442695
      %v376 = vpow.pop %v375
      %v377 = vmul.f32 %v374, 1.442695
      %v378 = vpow.pop %v377
      %v379 = vsel %vm155, %v376, 0.0
      %380 = vadd.xlane.f32.xlu0 %v379
      %v381 = vpop.xlane.xlu0 %380
      %v382 = vsel %vm155, %v378, 0.0
      %383 = vadd.xlane.f32.xlu0 %v382
      %v384 = vpop.xlane.xlu0 %383
      %v385 = vpack.c.bf16 %v378, %v376
      %386 = vrot.lane.b32.xlu0 %v179, 104
      %v387 = vpop.permute.xlu0 %386
      %v390 = vsel %vm155, %v385, 0
      %392 = vmatpush.bf16.msra.mxu0 0
      %393 = vmatpush.bf16.msra.mxu0 0
      %394 = vmatpush.bf16.msra.mxu0 0
      %395 = vmatpush.bf16.msra.mxu0 0
      %396 = vmatpush.bf16.msra.mxu0 0
      %397 = vmatpush.bf16.msra.mxu0 0
      %398 = vmatpush.bf16.msra.mxu0 0
      %399 = vmatpush.bf16.msra.mxu0 %v387
      %400 = vmatmul.bf16.gmra.mxu0 %v390
      %v401 = vpop.f32.mrf.mxu0
      %v402 = vadd.f32 0.0, %v401
      %v403 = vpop.f32.mrf.mxu0
      %v404 = vadd.f32 0.0, %v403
      %405 = vdwg.mxu0
      %v406 = vrcp.pop %v381
      %v407 = vrcp.pop %v384
      %v408 = vmul.f32 %v402, %v406
      %v409 = vmul.f32 %v404, %v407
      %v410 = vpack.c.bf16 %v408, %v408
      %v411 = vpack.c.bf16 %v409, %v409
      %412 = vrot.lane.b32.xlu0 %v126, 96
      %v413 = vpop.permute.xlu0 %412
      %414 = vrot.lane.b32.xlu0 %v131, 32
      %v415 = vpop.permute.xlu0 %414
      %v417 = vsel %vm134, %v413, 0
      %v420 = vsel %vm134, %v415, 0
      %422 = vmatpush.bf16.xpose.msra.mxu0 0
      %423 = vmatpush.bf16.xpose.msra.mxu0 0
      %424 = vmatpush.bf16.xpose.msra.mxu0 0
      %425 = vmatpush.bf16.xpose.msra.mxu0 0
      %426 = vmatpush.bf16.xpose.msra.mxu0 0
      %427 = vmatpush.bf16.xpose.msra.mxu0 0
      %428 = vmatpush.bf16.xpose.msra.mxu0 0
      %429 = vmatpush.bf16.xpose.msra.mxu0 %v420
      %430 = vmatmul.bf16.gmra.mxu0 %v417
      %v431 = vpop.f32.mrf.mxu0
      %v432 = vadd.f32 0.0, %v431
      %v433 = vpop.f32.mrf.mxu0
      %v434 = vadd.f32 0.0, %v433
      %435 = vdwg.mxu0
      %v436 = vsel %vm155, %v432, -inf
      %437 = vmax.xlane.f32.xlu0 %v436
      %v438 = vpop.xlane.xlu0 %437
      %v439 = vsel %vm155, %v434, -inf
      %440 = vmax.xlane.f32.xlu0 %v439
      %v441 = vpop.xlane.xlu0 %440
      %v442 = vsub.f32 %v432, %v438
      %v443 = vsub.f32 %v434, %v441
      %v444 = vmul.f32 %v442, 1.442695
      %v445 = vpow.pop %v444
      %v446 = vmul.f32 %v443, 1.442695
      %v447 = vpow.pop %v446
      %v448 = vsel %vm155, %v445, 0.0
      %449 = vadd.xlane.f32.xlu0 %v448
      %v450 = vpop.xlane.xlu0 %449
      %v451 = vsel %vm155, %v447, 0.0
      %452 = vadd.xlane.f32.xlu0 %v451
      %v453 = vpop.xlane.xlu0 %452
      %v454 = vpack.c.bf16 %v447, %v445
      %455 = vrot.lane.b32.xlu0 %v179, 96
      %v456 = vpop.permute.xlu0 %455
      %v459 = vsel %vm155, %v454, 0
      %461 = vmatpush.bf16.msra.mxu0 0
      %462 = vmatpush.bf16.msra.mxu0 0
      %463 = vmatpush.bf16.msra.mxu0 0
      %464 = vmatpush.bf16.msra.mxu0 0
      %465 = vmatpush.bf16.msra.mxu0 0
      %466 = vmatpush.bf16.msra.mxu0 0
      %467 = vmatpush.bf16.msra.mxu0 0
      %468 = vmatpush.bf16.msra.mxu0 %v456
      %469 = vmatmul.bf16.gmra.mxu0 %v459
      %v470 = vpop.f32.mrf.mxu0
      %v471 = vadd.f32 0.0, %v470
      %v472 = vpop.f32.mrf.mxu0
      %v473 = vadd.f32 0.0, %v472
      %474 = vdwg.mxu0
      %v475 = vrcp.pop %v450
      %v476 = vrcp.pop %v453
      %v477 = vmul.f32 %v471, %v475
      %v478 = vmul.f32 %v473, %v476
      %v479 = vpack.c.bf16 %v477, %v477
      %v480 = vpack.c.bf16 %v478, %v478
      %481 = vrot.lane.b32.xlu0 %v126, 88
      %v482 = vpop.permute.xlu0 %481
      %483 = vrot.lane.b32.xlu0 %v131, 24
      %v484 = vpop.permute.xlu0 %483
      %v486 = vsel %vm134, %v482, 0
      %v489 = vsel %vm134, %v484, 0
      %491 = vmatpush.bf16.xpose.msra.mxu0 0
      %492 = vmatpush.bf16.xpose.msra.mxu0 0
      %493 = vmatpush.bf16.xpose.msra.mxu0 0
      %494 = vmatpush.bf16.xpose.msra.mxu0 0
      %495 = vmatpush.bf16.xpose.msra.mxu0 0
      %496 = vmatpush.bf16.xpose.msra.mxu0 0
      %497 = vmatpush.bf16.xpose.msra.mxu0 0
      %498 = vmatpush.bf16.xpose.msra.mxu0 %v489
      %499 = vmatmul.bf16.gmra.mxu0 %v486
      %v500 = vpop.f32.mrf.mxu0
      %v501 = vadd.f32 0.0, %v500
      %v502 = vpop.f32.mrf.mxu0
      %v503 = vadd.f32 0.0, %v502
      %504 = vdwg.mxu0
      %v505 = vsel %vm155, %v501, -inf
      %506 = vmax.xlane.f32.xlu0 %v505
      %v507 = vpop.xlane.xlu0 %506
      %v508 = vsel %vm155, %v503, -inf
      %509 = vmax.xlane.f32.xlu0 %v508
      %v510 = vpop.xlane.xlu0 %509
      %v511 = vsub.f32 %v501, %v507
      %v512 = vsub.f32 %v503, %v510
      %v513 = vmul.f32 %v511, 1.442695
      %v514 = vpow.pop %v513
      %v515 = vmul.f32 %v512, 1.442695
      %v516 = vpow.pop %v515
      %v517 = vsel %vm155, %v514, 0.0
      %518 = vadd.xlane.f32.xlu0 %v517
      %v519 = vpop.xlane.xlu0 %518
      %v520 = vsel %vm155, %v516, 0.0
      %521 = vadd.xlane.f32.xlu0 %v520
      %v522 = vpop.xlane.xlu0 %521
      %v523 = vpack.c.bf16 %v516, %v514
      %524 = vrot.lane.b32.xlu0 %v179, 88
      %v525 = vpop.permute.xlu0 %524
      %v528 = vsel %vm155, %v523, 0
      %530 = vmatpush.bf16.msra.mxu0 0
      %531 = vmatpush.bf16.msra.mxu0 0
      %532 = vmatpush.bf16.msra.mxu0 0
      %533 = vmatpush.bf16.msra.mxu0 0
      %534 = vmatpush.bf16.msra.mxu0 0
      %535 = vmatpush.bf16.msra.mxu0 0
      %536 = vmatpush.bf16.msra.mxu0 0
      %537 = vmatpush.bf16.msra.mxu0 %v525
      %538 = vmatmul.bf16.gmra.mxu0 %v528
      %v539 = vpop.f32.mrf.mxu0
      %v540 = vadd.f32 0.0, %v539
      %v541 = vpop.f32.mrf.mxu0
      %v542 = vadd.f32 0.0, %v541
      %543 = vdwg.mxu0
      %v544 = vrcp.pop %v519
      %v545 = vrcp.pop %v522
      %v546 = vmul.f32 %v540, %v544
      %v547 = vmul.f32 %v542, %v545
      %v548 = vpack.c.bf16 %v546, %v546
      %v549 = vpack.c.bf16 %v547, %v547
      %550 = vrot.lane.b32.xlu0 %v126, 80
      %v551 = vpop.permute.xlu0 %550
      %552 = vrot.lane.b32.xlu0 %v131, 16
      %v553 = vpop.permute.xlu0 %552
      %v555 = vsel %vm134, %v551, 0
      %v558 = vsel %vm134, %v553, 0
      %560 = vmatpush.bf16.xpose.msra.mxu0 0
      %561 = vmatpush.bf16.xpose.msra.mxu0 0
      %562 = vmatpush.bf16.xpose.msra.mxu0 0
      %563 = vmatpush.bf16.xpose.msra.mxu0 0
      %564 = vmatpush.bf16.xpose.msra.mxu0 0
      %565 = vmatpush.bf16.xpose.msra.mxu0 0
      %566 = vmatpush.bf16.xpose.msra.mxu0 0
      %567 = vmatpush.bf16.xpose.msra.mxu0 %v558
      %568 = vmatmul.bf16.gmra.mxu0 %v555
      %v569 = vpop.f32.mrf.mxu0
      %v570 = vadd.f32 0.0, %v569
      %v571 = vpop.f32.mrf.mxu0
      %v572 = vadd.f32 0.0, %v571
      %573 = vdwg.mxu0
      %v574 = vsel %vm155, %v570, -inf
      %575 = vmax.xlane.f32.xlu0 %v574
      %v576 = vpop.xlane.xlu0 %575
      %v577 = vsel %vm155, %v572, -inf
      %578 = vmax.xlane.f32.xlu0 %v577
      %v579 = vpop.xlane.xlu0 %578
      %v580 = vsub.f32 %v570, %v576
      %v581 = vsub.f32 %v572, %v579
      %v582 = vmul.f32 %v580, 1.442695
      %v583 = vpow.pop %v582
      %v584 = vmul.f32 %v581, 1.442695
      %v585 = vpow.pop %v584
      %v586 = vsel %vm155, %v583, 0.0
      %587 = vadd.xlane.f32.xlu0 %v586
      %v588 = vpop.xlane.xlu0 %587
      %v589 = vsel %vm155, %v585, 0.0
      %590 = vadd.xlane.f32.xlu0 %v589
      %v591 = vpop.xlane.xlu0 %590
      %v592 = vpack.c.bf16 %v585, %v583
      %593 = vrot.lane.b32.xlu0 %v179, 80
      %v594 = vpop.permute.xlu0 %593
      %v597 = vsel %vm155, %v592, 0
      %599 = vmatpush.bf16.msra.mxu0 0
      %600 = vmatpush.bf16.msra.mxu0 0
      %601 = vmatpush.bf16.msra.mxu0 0
      %602 = vmatpush.bf16.msra.mxu0 0
      %603 = vmatpush.bf16.msra.mxu0 0
      %604 = vmatpush.bf16.msra.mxu0 0
      %605 = vmatpush.bf16.msra.mxu0 0
      %606 = vmatpush.bf16.msra.mxu0 %v594
      %607 = vmatmul.bf16.gmra.mxu0 %v597
      %v608 = vpop.f32.mrf.mxu0
      %v609 = vadd.f32 0.0, %v608
      %v610 = vpop.f32.mrf.mxu0
      %v611 = vadd.f32 0.0, %v610
      %612 = vdwg.mxu0
      %v613 = vrcp.pop %v588
      %v614 = vrcp.pop %v591
      %v615 = vmul.f32 %v609, %v613
      %v616 = vmul.f32 %v611, %v614
      %v617 = vpack.c.bf16 %v615, %v615
      %v618 = vpack.c.bf16 %v616, %v616
      %619 = vrot.lane.b32.xlu0 %v126, 72
      %v620 = vpop.permute.xlu0 %619
      %621 = vrot.lane.b32.xlu0 %v131, 8
      %v622 = vpop.permute.xlu0 %621
      %v624 = vsel %vm134, %v620, 0
      %v627 = vsel %vm134, %v622, 0
      %629 = vmatpush.bf16.xpose.msra.mxu0 0
      %630 = vmatpush.bf16.xpose.msra.mxu0 0
      %631 = vmatpush.bf16.xpose.msra.mxu0 0
      %632 = vmatpush.bf16.xpose.msra.mxu0 0
      %633 = vmatpush.bf16.xpose.msra.mxu0 0
      %634 = vmatpush.bf16.xpose.msra.mxu0 0
      %635 = vmatpush.bf16.xpose.msra.mxu0 0
      %636 = vmatpush.bf16.xpose.msra.mxu0 %v627
      %637 = vmatmul.bf16.gmra.mxu0 %v624
      %v638 = vpop.f32.mrf.mxu0
      %v639 = vadd.f32 0.0, %v638
      %v640 = vpop.f32.mrf.mxu0
      %v641 = vadd.f32 0.0, %v640
      %642 = vdwg.mxu0
      %v643 = vsel %vm155, %v639, -inf
      %644 = vmax.xlane.f32.xlu0 %v643
      %v645 = vpop.xlane.xlu0 %644
      %v646 = vsel %vm155, %v641, -inf
      %647 = vmax.xlane.f32.xlu0 %v646
      %v648 = vpop.xlane.xlu0 %647
      %v649 = vsub.f32 %v639, %v645
      %v650 = vsub.f32 %v641, %v648
      %v651 = vmul.f32 %v649, 1.442695
      %v652 = vpow.pop %v651
      %v653 = vmul.f32 %v650, 1.442695
      %v654 = vpow.pop %v653
      %v655 = vsel %vm155, %v652, 0.0
      %656 = vadd.xlane.f32.xlu0 %v655
      %v657 = vpop.xlane.xlu0 %656
      %v658 = vsel %vm155, %v654, 0.0
      %659 = vadd.xlane.f32.xlu0 %v658
      %v660 = vpop.xlane.xlu0 %659
      %v661 = vpack.c.bf16 %v654, %v652
      %662 = vrot.lane.b32.xlu0 %v179, 72
      %v663 = vpop.permute.xlu0 %662
      %v666 = vsel %vm155, %v661, 0
      %668 = vmatpush.bf16.msra.mxu0 0
      %669 = vmatpush.bf16.msra.mxu0 0
      %670 = vmatpush.bf16.msra.mxu0 0
      %671 = vmatpush.bf16.msra.mxu0 0
      %672 = vmatpush.bf16.msra.mxu0 0
      %673 = vmatpush.bf16.msra.mxu0 0
      %674 = vmatpush.bf16.msra.mxu0 0
      %675 = vmatpush.bf16.msra.mxu0 %v663
      %676 = vmatmul.bf16.gmra.mxu0 %v666
      %v677 = vpop.f32.mrf.mxu0
      %v678 = vadd.f32 0.0, %v677
      %v679 = vpop.f32.mrf.mxu0
      %v680 = vadd.f32 0.0, %v679
      %681 = vdwg.mxu0
      %v682 = vrcp.pop %v657
      %v683 = vrcp.pop %v660
      %v684 = vmul.f32 %v678, %v682
      %v685 = vmul.f32 %v680, %v683
      %v686 = vpack.c.bf16 %v684, %v684
      %v687 = vpack.c.bf16 %v685, %v685
      %v690 = vunpack.c.l.b16 %v202
      %v691 = vunpack.c.l.b16 %v203
      %v692 = vpack.c.b16 %v691, %v690
      %v695 = vunpack.c.l.b16 %v272
      %v696 = vunpack.c.l.b16 %v273
      %v697 = vpack.c.b16 %v696, %v695
      %698 = vrot.lane.b32.xlu0 %v697, 8
      %v699 = vpop.permute.xlu0 %698
      %v702 = vunpack.c.l.b16 %v341
      %v703 = vunpack.c.l.b16 %v342
      %v704 = vpack.c.b16 %v703, %v702
      %705 = vrot.lane.b32.xlu0 %v704, 16
      %v706 = vpop.permute.xlu0 %705
      %v709 = vunpack.c.l.b16 %v410
      %v710 = vunpack.c.l.b16 %v411
      %v711 = vpack.c.b16 %v710, %v709
      %712 = vrot.lane.b32.xlu0 %v711, 24
      %v713 = vpop.permute.xlu0 %712
      %v716 = vunpack.c.l.b16 %v479
      %v717 = vunpack.c.l.b16 %v480
      %v718 = vpack.c.b16 %v717, %v716
      %719 = vrot.lane.b32.xlu0 %v718, 32
      %v720 = vpop.permute.xlu0 %719
      %v723 = vunpack.c.l.b16 %v548
      %v724 = vunpack.c.l.b16 %v549
      %v725 = vpack.c.b16 %v724, %v723
      %726 = vrot.lane.b32.xlu0 %v725, 40
      %v727 = vpop.permute.xlu0 %726
      %v730 = vunpack.c.l.b16 %v617
      %v731 = vunpack.c.l.b16 %v618
      %v732 = vpack.c.b16 %v731, %v730
      %733 = vrot.lane.b32.xlu0 %v732, 48
      %v734 = vpop.permute.xlu0 %733
      %v737 = vunpack.c.l.b16 %v686
      %v738 = vunpack.c.l.b16 %v687
      %v739 = vpack.c.b16 %v738, %v737
      %740 = vrot.lane.b32.xlu0 %v739, 56
      %v741 = vpop.permute.xlu0 %740
      %v744 = vsel %vm134, %v692, %v699
      %v746 = vsel %vm155, %v744, %v706
      %vm747 = vcmask 195584
      %v749 = vsel %vm747, %v746, %v713
      %vm750 = vcmask 261120
      %v752 = vsel %vm750, %v749, %v720
      %vm753 = vcmask 326656
      %v755 = vsel %vm753, %v752, %v727
      %vm756 = vcmask 392192
      %v758 = vsel %vm756, %v755, %v734
      %vm759 = vcmask 457728
      %v761 = vsel %vm759, %v758, %v741
      %v763 = vunpack.c.l.b16 %v761
      %v764 = vunpack.c.h.b16 %v761
      %v765 = vpack.c.b16 %v763, %v763
      %v766 = vpack.c.b16 %v764, %v764
      %vm769 = vcmask 519168
      %770 = vst.msk [vmem:[%s116] sm:$0xf] %vm769, %v765
      %771 = vst.msk [vmem:[%s116 + $0x4] sm:$0xf] %vm769, %v766
      %p772 = scmp.lt.s32.totalorder %s12, 1
      %s773 = scalar_select %p772, %s12, 1
      %s774 = smul.addr %s773, 2
      %s775 = smul.addr %s774, 4
      %s776 = scalar_lea.vmem %s1, %s775
      // Predicated region
      $region25: #{attention_forward.4} parent=23 // pred_check
        %p777 = pneg %p56
      $region26: #{attention_forward.4} parent=23 // pred_check_branch
        %779 = sbr.rel (%p777) target = $region28
      $region27: #{attention_forward.4} parent=23 // pred_region
        _
      $region28: #{attention_forward.4} parent=23 // pred_fallthru
        _
    $region24: #{attention_forward.4} parent=5 // pred_fallthru
      _
    %p780 = scmp.le.s32.totalorder 2, %s7
    // Predicated region
    $region29: #{attention_forward.4} parent=5 // pred_check
      %p781 = pneg %p780
    $region30: #{attention_forward.4} parent=5 // pred_check_branch
      %783 = sbr.rel (%p781) target = $region32
    $region31: #{attention_forward.4} parent=5 // pred_region
      %s784 = ssub.s32 %s7, 2
      // Predicated region
      $region33: #{attention_forward.4} parent=31 // pred_check
        %p785 = pneg %p62
      $region34: #{attention_forward.4} parent=31 // pred_check_branch
        %787 = sbr.rel (%p785) target = $region36
      $region35: #{attention_forward.4} parent=31 // pred_region
        %p788 = scmp.lt.s32.totalorder %s13, 1
        %s789 = scalar_select %p788, %s13, 1
        %s790 = smul.addr %s789, 2
        %s791 = smul.addr %s790, 4
        %s792 = scalar_lea.vmem %s1, %s791
      $region36: #{attention_forward.4} parent=31 // pred_fallthru
        _
    $region32: #{attention_forward.4} parent=5 // pred_fallthru
      _
  $region6: #{attention_forward.4} parent=0 // loop_footer
    %s11 = sadd.s32 1, %s7
  $region7: #{attention_forward.4} parent=0 // loop_footer_branch
    %6 = sbr.rel target = $region3
  $region8: #{attention_forward.4} parent=0 // loop_exit
    _

</llo_original>
